<compile_context>
chip_gen: v7x
topology: tpu7x:2x2x1
jax: 0.10.0
libtpu: 0.0.40
codegen_flags: <defaults>
</compile_context>

<pallas_src>
import jax
import jax.numpy as jnp
import numpy as np
from jax.experimental import pallas as pl
from jax.experimental.pallas import tpu as pltpu

L_IN = 128          # input signal length (GRU input_size=32 after two /2 pools)
HID = 8             # GRU hidden size
SEQ = 4             # GRU sequence length (= channels out of conv stack)
GW = 3 * 2 * HID    # fused gate width: 3 gates x (fwd 8 | bwd 8) = 48
NEG_SLOPE = 0.01    # LeakyReLU default
BN_EPS = 1e-4

# packed-weight slab layout (rows x 48 lanes) — every region starts on an 8-row boundary
ROW_WIH = 0         # 128 rows : GRU input weights, row 4p = feature p (pool-2 fold)
ROW_WHH = 128       # 16 rows  : block-diagonal recurrent weights (fwd rows 0:8, bwd 8:16)
ROW_BI = 144        # 1 row    : fused b_ih (+ b_hh folded in for the r and z gates)
ROW_BHN = 152       # 1 row    : n-gate b_hh only (lanes 32:48), zeros elsewhere
ROW_W1 = 160        # 8 rows   : conv1 weight [8,5] in lanes 0:5 (lanes 5:8 zero pad)
ROW_W2 = 168        # 4 rows   : conv2 weight [4,40] (tap-major) in lanes 0:40
PACK_ROWS = 176
PACK_COLS = GW


# ---------------- in-kernel helpers (traced inside the Pallas kernel) ----------------

def _leaky(y):
    return jnp.where(y > 0, y, NEG_SLOPE * y)


def _bn_full(y):
    # training-mode BatchNorm1d with N=1: per-sample/per-channel stats over length, biased var
    mean = jnp.mean(y, axis=1, keepdims=True)
    var = jnp.mean((y - mean) ** 2, axis=1, keepdims=True)
    return (y - mean) * jax.lax.rsqrt(var + BN_EPS)


def _bn_masked(y, valid, count):
    # BN where only `valid` lanes hold real data (even-expanded representation)
    inv = 1.0 / count
    mean = jnp.sum(jnp.where(valid, y, 0.0), axis=1, keepdims=True) * inv
    d = y - mean
    var = jnp.sum(jnp.where(valid, d * d, 0.0), axis=1, keepdims=True) * inv
    return d * jax.lax.rsqrt(var + BN_EPS)


# ------------------------------------ kernel ------------------------------------

def hnet_kernel(x_ref, w_ref, o_ref):
    pos = jax.lax.broadcasted_iota(jnp.int32, (1, L_IN), 1)          # [1,128]

    # compile-time one-sided boundary masks, shared across all taps with the same shift
    masks = {}
    for d in (-4, -2, -1, 1, 2, 4):
        masks[d] = (pos < (L_IN - d)) if d > 0 else (pos >= (-d))

    def shift_zero(arr, d):
        """result[:, j] = arr[:, j + d], zero-filled outside [0, L_IN)."""
        if d == 0:
            return arr
        return jnp.where(masks[d], pltpu.roll(arr, shift=(-d) % L_IN, axis=1), 0.0)

    x = x_ref[0]                                                      # [1,128]

    # ---- layer 1: Conv1d(1->8,k5,p2) as one MXU matmul, + BN + LeakyReLU ----
    w1 = w_ref[ROW_W1:ROW_W1 + 8, 0:8]                                # [8,8] (cols 5:8 zero)
    zrow = jnp.zeros((1, L_IN), jnp.float32)
    xst1 = jnp.concatenate(
        [shift_zero(x, k - 2) for k in range(5)] + [zrow, zrow, zrow], axis=0)  # [8,128]
    y1 = jnp.dot(w1, xst1, preferred_element_type=jnp.float32)        # [8,128]
    y1 = _leaky(_bn_full(y1))
    # MaxPool1d(2,2): pooled1[c,p] lives at lane 2p of m1 (even-expanded, width 128)
    m1 = jnp.maximum(y1, pltpu.roll(y1, shift=L_IN - 1, axis=1))      # [8,128]

    # ---- layer 2: Conv1d(8->4,k5,p2) on the even-expanded rep (one MXU matmul) ----
    w2 = w_ref[ROW_W2:ROW_W2 + 4, 0:40]                               # [4,40]
    xst2 = jnp.concatenate([shift_zero(m1, 2 * (k - 2)) for k in range(5)], axis=0)  # [40,128]
    y2 = jnp.dot(w2, xst2, preferred_element_type=jnp.float32)        # [4,128] @ even lanes
    even = (pos % 2) == 0
    y2 = _leaky(_bn_masked(y2, even, 64.0))
    # MaxPool1d(2,2): pooled2[c,p] lives at lane 4p of m2
    m2 = jnp.maximum(y2, pltpu.roll(y2, shift=L_IN - 2, axis=1))      # [4,128]

    # ---- fused bidirectional GRU (one 4-step recurrence over [h_fwd | h_bwd]) ----
    wih = w_ref[ROW_WIH:ROW_WIH + 128, :]                             # [128,48]
    whh = w_ref[ROW_WHH:ROW_WHH + 16, :]                              # [16,48] block-diag
    bi = w_ref[ROW_BI:ROW_BI + 1, :]                                  # [1,48] (r,z bhh folded)
    bhn = w_ref[ROW_BHN:ROW_BHN + 1, :]                               # [1,48] n-gate bhh only
    # pool-2 even-lane selection folded into wih (zero rows at lanes not = 4p)
    gi_all = jnp.dot(m2, wih, preferred_element_type=jnp.float32) + bi    # [4,48]

    lane = jax.lax.broadcasted_iota(jnp.int32, (1, GW), 1)
    is_fwd = (lane % (2 * HID)) < HID                                 # fwd half of each gate
    # hoist the per-step direction select: fwd lanes read time s, bwd lanes read time 3-s
    gi_rev = jnp.concatenate([gi_all[SEQ - 1 - s:SEQ - s, :] for s in range(SEQ)], axis=0)
    gi_sel = jnp.where(is_fwd, gi_all, gi_rev)                        # [4,48]

    h = jnp.zeros((1, 2 * HID), jnp.float32)                          # [h_fwd | h_bwd]
    hs = []
    for s in range(SEQ):
        # bhn is zero outside the n-gate lanes, so adding it leaves r/z lanes untouched;
        # the n-gate b_hh must stay inside r*(gh_n + b_hn) to match PyTorch GRU semantics.
        gh = jnp.dot(h, whh, preferred_element_type=jnp.float32) + bhn    # [1,48]
        gi = gi_sel[s:s + 1, :]
        r = jax.nn.sigmoid(gi[:, 0:16] + gh[:, 0:16])
        z = jax.nn.sigmoid(gi[:, 16:32] + gh[:, 16:32])
        n = jnp.tanh(gi[:, 32:48] + r * gh[:, 32:48])
        h = (1.0 - z) * n + z * h
        hs.append(h)

    # single dense store: row t = [fwd state of time t | bwd state of time t]
    rows = [jnp.concatenate([hs[t][:, 0:HID], hs[SEQ - 1 - t][:, HID:2 * HID]], axis=1)
            for t in range(SEQ)]
    o_ref[0] = jnp.concatenate(rows, axis=0)                          # [4,16]


@jax.jit
def hnet_forward(x, wpack):
    """x: [B, 128] (or [128]) -> [B, 64], each row processed with per-sample BN stats."""
    x3 = x.reshape(-1, 1, L_IN).astype(jnp.float32)                   # [B,1,128]
    B = x3.shape[0]
    out = pl.pallas_call(
        hnet_kernel,
        out_shape=jax.ShapeDtypeStruct((B, SEQ, 2 * HID), jnp.float32),
        grid=(B,),
        in_specs=[
            pl.BlockSpec((1, 1, L_IN), lambda b: (b, 0, 0)),
            # constant index_map: the ~34 KB weight slab is DMA'd once and stays resident
            pl.BlockSpec((PACK_ROWS, PACK_COLS), lambda b: (0, 0)),
        ],
        out_specs=pl.BlockSpec((1, SEQ, 2 * HID), lambda b: (b, 0, 0)),
        compiler_params=pltpu.CompilerParams(dimension_semantics=("parallel",)),
        cost_estimate=pl.CostEstimate(
            flops=B * 120_000,
            transcendentals=B * 200,
            bytes_accessed=B * (L_IN + SEQ * 2 * HID) * 4 + PACK_ROWS * PACK_COLS * 4,
        ),
    )(x3, wpack)
    return out.reshape(B, SEQ * 2 * HID)


# --------------------------- params, packing & pure-JAX reference ---------------------------

def init_params(key):
    ks = jax.random.split(key, 10)

    def nrm(k, shape, scale=0.2):
        return scale * jax.random.normal(k, shape, jnp.float32)

    # PyTorch-layout weights
    return {
        "conv1": nrm(ks[0], (8, 1, 5)),              # Conv1d(1->8,k=5).weight
        "conv2": nrm(ks[1], (4, 8, 5)),              # Conv1d(8->4,k=5).weight
        "wih_f": nrm(ks[2], (3 * HID, 32)), "whh_f": nrm(ks[3], (3 * HID, HID)),
        "bih_f": nrm(ks[4], (3 * HID,)),    "bhh_f": nrm(ks[5], (3 * HID,)),
        "wih_b": nrm(ks[6], (3 * HID, 32)), "whh_b": nrm(ks[7], (3 * HID, HID)),
        "bih_b": nrm(ks[8], (3 * HID,)),    "bhh_b": nrm(ks[9], (3 * HID,)),
    }


def pack_weights(p):
    """Assemble the single f32 weight slab consumed by the kernel (host-side numpy)."""
    w = np.zeros((PACK_ROWS, PACK_COLS), np.float32)
    wih_f = np.asarray(p["wih_f"]); wih_b = np.asarray(p["wih_b"])
    whh_f = np.asarray(p["whh_f"]); whh_b = np.asarray(p["whh_b"])
    bih_f = np.asarray(p["bih_f"]); bih_b = np.asarray(p["bih_b"])
    bhh_f = np.asarray(p["bhh_f"]); bhh_b = np.asarray(p["bhh_b"])
    for g in range(3):                                  # PyTorch gate order (r, z, n)
        cf, cb = 16 * g, 16 * g + HID
        # GRU input weights: feature p sits at lane 4p of m2 (pool-2 fold) -> row 4p
        w[ROW_WIH:ROW_WIH + 128:4, cf:cf + HID] = wih_f[8 * g:8 * g + 8, :].T
        w[ROW_WIH:ROW_WIH + 128:4, cb:cb + HID] = wih_b[8 * g:8 * g + 8, :].T
        # block-diagonal recurrent weights (fwd h rows 0:8, bwd h rows 8:16)
        w[ROW_WHH:ROW_WHH + 8, cf:cf + HID] = whh_f[8 * g:8 * g + 8, :].T
        w[ROW_WHH + 8:ROW_WHH + 16, cb:cb + HID] = whh_b[8 * g:8 * g + 8, :].T
        # biases: b_ih always; fold b_hh for r,z gates (g<2), keep n-gate b_hh separate
        w[ROW_BI, cf:cf + HID] = bih_f[8 * g:8 * g + 8]
        w[ROW_BI, cb:cb + HID] = bih_b[8 * g:8 * g + 8]
        if g < 2:
            w[ROW_BI, cf:cf + HID] += bhh_f[8 * g:8 * g + 8]
            w[ROW_BI, cb:cb + HID] += bhh_b[8 * g:8 * g + 8]
        else:
            w[ROW_BHN, cf:cf + HID] = bhh_f[8 * g:8 * g + 8]
            w[ROW_BHN, cb:cb + HID] = bhh_b[8 * g:8 * g + 8]
    # conv1 [8,1,5] -> [8,5] in lanes 0:5 (lanes 5:8 stay zero -> padded K=8 MXU dot)
    w[ROW_W1:ROW_W1 + 8, 0:5] = np.asarray(p["conv1"])[:, 0, :]
    # conv2 [4,8,5] -> [4,40], tap-major: col k*8+i = weight[o,i,k]
    w[ROW_W2:ROW_W2 + 4, 0:40] = np.transpose(np.asarray(p["conv2"]), (0, 2, 1)).reshape(4, 40)
    return jnp.asarray(w)


def hnet_reference(x, p):
    """Pure-JAX reference for ONE signal of length 128 -> [1, 64]."""
    xin = x.reshape(1, 1, L_IN).astype(jnp.float32)                    # NCL

    def block(inp, w):
        y = jax.lax.conv_general_dilated(inp, w, (1,), [(2, 2)],
                                         dimension_numbers=("NCH", "OIH", "NCH"))
        mean = jnp.mean(y, axis=(0, 2), keepdims=True)
        var = jnp.mean((y - mean) ** 2, axis=(0, 2), keepdims=True)
        y = (y - mean) / jnp.sqrt(var + BN_EPS)
        y = jnp.where(y > 0, y, NEG_SLOPE * y)
        return jnp.max(y.reshape(y.shape[0], y.shape[1], -1, 2), axis=-1)

    xseq = block(block(xin, p["conv1"]), p["conv2"])[0]                # [4, 32]

    def scan(xs, wih, whh, bih, bhh, reverse):
        T = xs.shape[0]
        h = jnp.zeros((1, HID), jnp.float32)
        outs = [None] * T
        for t in (range(T - 1, -1, -1) if reverse else range(T)):
            gi = xs[t:t + 1] @ wih.T + bih
            gh = h @ whh.T + bhh
            r = jax.nn.sigmoid(gi[:, :HID] + gh[:, :HID])
            z = jax.nn.sigmoid(gi[:, HID:2 * HID] + gh[:, HID:2 * HID])
            n = jnp.tanh(gi[:, 2 * HID:] + r * gh[:, 2 * HID:])
            h = (1 - z) * n + z * h
            outs[t] = h
        return outs

    fwd = scan(xseq, p["wih_f"], p["whh_f"], p["bih_f"], p["bhh_f"], False)
    bwd = scan(xseq, p["wih_b"], p["whh_b"], p["bih_b"], p["bhh_b"], True)
    return jnp.concatenate([h for t in range(SEQ) for h in (fwd[t], bwd[t])], axis=1)


if __name__ == "__main__":
    key = jax.random.PRNGKey(0)
    kx, kp = jax.random.split(key)
    B = 8                                            # batch of independent 1-D signals
    x = jax.random.normal(kx, (B, L_IN), jnp.float32)
    params = init_params(kp)
    wpack = pack_weights(params)

    out = jax.block_until_ready(hnet_forward(x, wpack))
    ref = jnp.concatenate([hnet_reference(x[b], params) for b in range(B)], axis=0)
    ref = jax.block_until_ready(ref)

    assert out.shape == (B, SEQ * 2 * HID), out.shape
    np.testing.assert_allclose(np.asarray(out), np.asarray(ref), rtol=5e-3, atol=5e-3)
    print("KERNEL_OK")
</pallas_src>

<mosaic_0001>
module attributes {stable_mosaic.version = 11 : i64} {
  func.func @hnet_kernel(%arg0: i32, %arg1: memref<1x1x128xf32, #tpu.memory_space<vmem>>, %arg2: memref<176x48xf32, #tpu.memory_space<vmem>>, %arg3: memref<1x4x16xf32, #tpu.memory_space<vmem>>) attributes {dimension_semantics = [#tpu.dimension_semantics<parallel>], iteration_bounds = array<i64: 8>, scalar_prefetch = 0 : i64, scratch_operands = 0 : i64, tpu.core_type = #tpu.core_type<tc>, window_params = [{transform_indices = @transform_0, window_bounds = array<i64: 1, 1, 128>}, {pipeline_mode = #tpu.pipeline_mode<synchronous>, transform_indices = @transform_1, window_bounds = array<i64: 176, 48>}, {transform_indices = @transform_2, window_bounds = array<i64: 1, 4, 16>}]} {
    %0 = tpu.iota {dimensions = array<i32: 1>} : vector<1x128xi32>
    %c4_i32 = arith.constant 4 : i32
    %1 = vector.broadcast %c4_i32 : i32 to vector<1x128xi32>
    %2 = arith.cmpi sge, %0, %1 : vector<1x128xi32>
    %c2_i32 = arith.constant 2 : i32
    %3 = vector.broadcast %c2_i32 : i32 to vector<1x128xi32>
    %4 = arith.cmpi sge, %0, %3 : vector<1x128xi32>
    %c1_i32 = arith.constant 1 : i32
    %5 = vector.broadcast %c1_i32 : i32 to vector<1x128xi32>
    %6 = arith.cmpi sge, %0, %5 : vector<1x128xi32>
    %c127_i32 = arith.constant 127 : i32
    %7 = vector.broadcast %c127_i32 : i32 to vector<1x128xi32>
    %8 = arith.cmpi slt, %0, %7 : vector<1x128xi32>
    %c126_i32 = arith.constant 126 : i32
    %9 = vector.broadcast %c126_i32 : i32 to vector<1x128xi32>
    %10 = arith.cmpi slt, %0, %9 : vector<1x128xi32>
    %c124_i32 = arith.constant 124 : i32
    %11 = vector.broadcast %c124_i32 : i32 to vector<1x128xi32>
    %12 = arith.cmpi slt, %0, %11 : vector<1x128xi32>
    %c0 = arith.constant 0 : index
    %c0_0 = arith.constant 0 : index
    %c0_1 = arith.constant 0 : index
    %13 = vector.load %arg1[%c0, %c0_0, %c0_1] : memref<1x1x128xf32, #tpu.memory_space<vmem>>, vector<1x1x128xf32>
    %14 = vector.shape_cast %13 : vector<1x1x128xf32> to vector<1x128xf32>
    %c160 = arith.constant 160 : index
    %c0_2 = arith.constant 0 : index
    %15 = vector.load %arg2[%c160, %c0_2] : memref<176x48xf32, #tpu.memory_space<vmem>>, vector<8x8xf32>
    %cst = arith.constant 0.000000e+00 : f32
    %16 = vector.broadcast %cst : f32 to vector<1x128xf32>
    %c2_i32_3 = arith.constant 2 : i32
    %17 = tpu.dynamic_rotate %14 by %c2_i32_3 dim 1 : vector<1x128xf32>, i32 -> vector<1x128xf32>
    %cst_4 = arith.constant 0.000000e+00 : f32
    %18 = vector.broadcast %cst_4 : f32 to vector<1x128xf32>
    %19 = arith.select %4, %17, %18 : vector<1x128xi1>, vector<1x128xf32>
    %c1_i32_5 = arith.constant 1 : i32
    %20 = tpu.dynamic_rotate %14 by %c1_i32_5 dim 1 : vector<1x128xf32>, i32 -> vector<1x128xf32>
    %cst_6 = arith.constant 0.000000e+00 : f32
    %21 = vector.broadcast %cst_6 : f32 to vector<1x128xf32>
    %22 = arith.select %6, %20, %21 : vector<1x128xi1>, vector<1x128xf32>
    %c127_i32_7 = arith.constant 127 : i32
    %23 = tpu.dynamic_rotate %14 by %c127_i32_7 dim 1 : vector<1x128xf32>, i32 -> vector<1x128xf32>
    %cst_8 = arith.constant 0.000000e+00 : f32
    %24 = vector.broadcast %cst_8 : f32 to vector<1x128xf32>
    %25 = arith.select %8, %23, %24 : vector<1x128xi1>, vector<1x128xf32>
    %c126_i32_9 = arith.constant 126 : i32
    %26 = tpu.dynamic_rotate %14 by %c126_i32_9 dim 1 : vector<1x128xf32>, i32 -> vector<1x128xf32>
    %cst_10 = arith.constant 0.000000e+00 : f32
    %27 = vector.broadcast %cst_10 : f32 to vector<1x128xf32>
    %28 = arith.select %10, %26, %27 : vector<1x128xi1>, vector<1x128xf32>
    %29 = tpu.concatenate %19, %22, %14, %25, %28, %16, %16, %16 in 0 : vector<1x128xf32>, vector<1x128xf32>, vector<1x128xf32>, vector<1x128xf32>, vector<1x128xf32>, vector<1x128xf32>, vector<1x128xf32>, vector<1x128xf32> -> vector<8x128xf32>
    %cst_11 = arith.constant dense<0.000000e+00> : vector<8x128xf32>
    %30 = tpu.matmul %15, %29, %cst_11 {dimension_numbers = #tpu.dot_dimension_numbers<[1], [0], [0], [1], [0, 0, 1, 1], [], []>} : vector<8x8xf32>, vector<8x128xf32>, vector<8x128xf32> -> vector<8x128xf32>
    %cst_12 = arith.constant dense<0.000000e+00> : vector<8xf32>
    %31 = vector.multi_reduction <add>, %30, %cst_12 [1] : vector<8x128xf32> to vector<8xf32>
    %32 = vector.shape_cast %31 : vector<8xf32> to vector<8x1xf32>
    %cst_13 = arith.constant 1.280000e+02 : f32
    %33 = vector.broadcast %cst_13 : f32 to vector<8x1xf32>
    %34 = arith.divf %32, %33 : vector<8x1xf32>
    %35 = vector.broadcast %34 : vector<8x1xf32> to vector<8x128xf32>
    %36 = arith.subf %30, %35 : vector<8x128xf32>
    %37 = arith.mulf %36, %36 : vector<8x128xf32>
    %cst_14 = arith.constant dense<0.000000e+00> : vector<8xf32>
    %38 = vector.multi_reduction <add>, %37, %cst_14 [1] : vector<8x128xf32> to vector<8xf32>
    %39 = vector.shape_cast %38 : vector<8xf32> to vector<8x1xf32>
    %cst_15 = arith.constant 1.280000e+02 : f32
    %40 = vector.broadcast %cst_15 : f32 to vector<8x1xf32>
    %41 = arith.divf %39, %40 : vector<8x1xf32>
    %42 = vector.broadcast %34 : vector<8x1xf32> to vector<8x128xf32>
    %43 = arith.subf %30, %42 : vector<8x128xf32>
    %cst_16 = arith.constant 9.99999974E-5 : f32
    %44 = vector.broadcast %cst_16 : f32 to vector<8x1xf32>
    %45 = arith.addf %41, %44 : vector<8x1xf32>
    %46 = math.rsqrt %45 : vector<8x1xf32>
    %47 = vector.broadcast %46 : vector<8x1xf32> to vector<8x128xf32>
    %48 = arith.mulf %43, %47 : vector<8x128xf32>
    %cst_17 = arith.constant 0.000000e+00 : f32
    %49 = vector.broadcast %cst_17 : f32 to vector<8x128xf32>
    %50 = arith.cmpf ogt, %48, %49 : vector<8x128xf32>
    %cst_18 = arith.constant 0.00999999977 : f32
    %51 = vector.broadcast %cst_18 : f32 to vector<8x128xf32>
    %52 = arith.mulf %51, %48 : vector<8x128xf32>
    %53 = arith.select %50, %48, %52 : vector<8x128xi1>, vector<8x128xf32>
    %c127_i32_19 = arith.constant 127 : i32
    %54 = tpu.dynamic_rotate %53 by %c127_i32_19 dim 1 : vector<8x128xf32>, i32 -> vector<8x128xf32>
    %55 = arith.maximumf %53, %54 : vector<8x128xf32>
    %c168 = arith.constant 168 : index
    %c0_20 = arith.constant 0 : index
    %56 = vector.load %arg2[%c168, %c0_20] : memref<176x48xf32, #tpu.memory_space<vmem>>, vector<4x40xf32>
    %c4_i32_21 = arith.constant 4 : i32
    %57 = tpu.dynamic_rotate %55 by %c4_i32_21 dim 1 : vector<8x128xf32>, i32 -> vector<8x128xf32>
    %cst_22 = arith.constant 0.000000e+00 : f32
    %58 = vector.shape_cast %2 : vector<1x128xi1> to vector<1x128xi1>
    %59 = vector.broadcast %58 : vector<1x128xi1> to vector<8x128xi1>
    %60 = vector.broadcast %cst_22 : f32 to vector<8x128xf32>
    %61 = arith.select %59, %57, %60 : vector<8x128xi1>, vector<8x128xf32>
    %c2_i32_23 = arith.constant 2 : i32
    %62 = tpu.dynamic_rotate %55 by %c2_i32_23 dim 1 : vector<8x128xf32>, i32 -> vector<8x128xf32>
    %cst_24 = arith.constant 0.000000e+00 : f32
    %63 = vector.shape_cast %4 : vector<1x128xi1> to vector<1x128xi1>
    %64 = vector.broadcast %63 : vector<1x128xi1> to vector<8x128xi1>
    %65 = vector.broadcast %cst_24 : f32 to vector<8x128xf32>
    %66 = arith.select %64, %62, %65 : vector<8x128xi1>, vector<8x128xf32>
    %c126_i32_25 = arith.constant 126 : i32
    %67 = tpu.dynamic_rotate %55 by %c126_i32_25 dim 1 : vector<8x128xf32>, i32 -> vector<8x128xf32>
    %cst_26 = arith.constant 0.000000e+00 : f32
    %68 = vector.shape_cast %10 : vector<1x128xi1> to vector<1x128xi1>
    %69 = vector.broadcast %68 : vector<1x128xi1> to vector<8x128xi1>
    %70 = vector.broadcast %cst_26 : f32 to vector<8x128xf32>
    %71 = arith.select %69, %67, %70 : vector<8x128xi1>, vector<8x128xf32>
    %c124_i32_27 = arith.constant 124 : i32
    %72 = tpu.dynamic_rotate %55 by %c124_i32_27 dim 1 : vector<8x128xf32>, i32 -> vector<8x128xf32>
    %cst_28 = arith.constant 0.000000e+00 : f32
    %73 = vector.shape_cast %12 : vector<1x128xi1> to vector<1x128xi1>
    %74 = vector.broadcast %73 : vector<1x128xi1> to vector<8x128xi1>
    %75 = vector.broadcast %cst_28 : f32 to vector<8x128xf32>
    %76 = arith.select %74, %72, %75 : vector<8x128xi1>, vector<8x128xf32>
    %77 = tpu.concatenate %61, %66, %55, %71, %76 in 0 : vector<8x128xf32>, vector<8x128xf32>, vector<8x128xf32>, vector<8x128xf32>, vector<8x128xf32> -> vector<40x128xf32>
    %cst_29 = arith.constant dense<0.000000e+00> : vector<4x128xf32>
    %78 = tpu.matmul %56, %77, %cst_29 {dimension_numbers = #tpu.dot_dimension_numbers<[1], [0], [0], [1], [0, 0, 1, 1], [], []>} : vector<4x40xf32>, vector<40x128xf32>, vector<4x128xf32> -> vector<4x128xf32>
    %c2_i32_30 = arith.constant 2 : i32
    %c0_i32 = arith.constant 0 : i32
    %79 = arith.cmpi eq, %c2_i32_30, %c0_i32 : i32
    %c1_i32_31 = arith.constant 1 : i32
    %80 = arith.select %79, %c1_i32_31, %c2_i32_30 : i32
    %81 = vector.broadcast %80 : i32 to vector<1x128xi32>
    %82 = arith.remsi %0, %81 : vector<1x128xi32>
    %c0_i32_32 = arith.constant 0 : i32
    %83 = vector.broadcast %c0_i32_32 : i32 to vector<1x128xi32>
    %84 = arith.cmpi ne, %82, %83 : vector<1x128xi32>
    %c0_i32_33 = arith.constant 0 : i32
    %85 = vector.broadcast %c0_i32_33 : i32 to vector<1x128xi32>
    %86 = arith.cmpi slt, %82, %85 : vector<1x128xi32>
    %c0_i32_34 = arith.constant 0 : i32
    %87 = arith.cmpi slt, %80, %c0_i32_34 : i32
    %88 = vector.broadcast %87 : i1 to vector<1x128xi1>
    %89 = vector.broadcast %88 : vector<1x128xi1> to vector<1x128xi1>
    %90 = arith.xori %86, %89 : vector<1x128xi1>
    %91 = arith.andi %90, %84 : vector<1x128xi1>
    %92 = vector.broadcast %80 : i32 to vector<1x128xi32>
    %93 = arith.addi %82, %92 : vector<1x128xi32>
    %94 = arith.select %91, %93, %82 : vector<1x128xi1>, vector<1x128xi32>
    %c0_i32_35 = arith.constant 0 : i32
    %95 = vector.broadcast %c0_i32_35 : i32 to vector<1x128xi32>
    %96 = arith.cmpi eq, %94, %95 : vector<1x128xi32>
    %cst_36 = arith.constant 0.000000e+00 : f32
    %97 = vector.shape_cast %96 : vector<1x128xi1> to vector<1x128xi1>
    %98 = vector.broadcast %97 : vector<1x128xi1> to vector<4x128xi1>
    %99 = vector.broadcast %cst_36 : f32 to vector<4x128xf32>
    %100 = arith.select %98, %78, %99 : vector<4x128xi1>, vector<4x128xf32>
    %cst_37 = arith.constant dense<0.000000e+00> : vector<4xf32>
    %101 = vector.multi_reduction <add>, %100, %cst_37 [1] : vector<4x128xf32> to vector<4xf32>
    %102 = vector.shape_cast %101 : vector<4xf32> to vector<4x1xf32>
    %cst_38 = arith.constant 1.562500e-02 : f32
    %103 = vector.broadcast %cst_38 : f32 to vector<4x1xf32>
    %104 = arith.mulf %102, %103 : vector<4x1xf32>
    %105 = vector.broadcast %104 : vector<4x1xf32> to vector<4x128xf32>
    %106 = arith.subf %78, %105 : vector<4x128xf32>
    %107 = arith.mulf %106, %106 : vector<4x128xf32>
    %cst_39 = arith.constant 0.000000e+00 : f32
    %108 = vector.shape_cast %96 : vector<1x128xi1> to vector<1x128xi1>
    %109 = vector.broadcast %108 : vector<1x128xi1> to vector<4x128xi1>
    %110 = vector.broadcast %cst_39 : f32 to vector<4x128xf32>
    %111 = arith.select %109, %107, %110 : vector<4x128xi1>, vector<4x128xf32>
    %cst_40 = arith.constant dense<0.000000e+00> : vector<4xf32>
    %112 = vector.multi_reduction <add>, %111, %cst_40 [1] : vector<4x128xf32> to vector<4xf32>
    %113 = vector.shape_cast %112 : vector<4xf32> to vector<4x1xf32>
    %cst_41 = arith.constant 1.562500e-02 : f32
    %114 = vector.broadcast %cst_41 : f32 to vector<4x1xf32>
    %115 = arith.mulf %113, %114 : vector<4x1xf32>
    %cst_42 = arith.constant 9.99999974E-5 : f32
    %116 = vector.broadcast %cst_42 : f32 to vector<4x1xf32>
    %117 = arith.addf %115, %116 : vector<4x1xf32>
    %118 = math.rsqrt %117 : vector<4x1xf32>
    %119 = vector.broadcast %118 : vector<4x1xf32> to vector<4x128xf32>
    %120 = arith.mulf %106, %119 : vector<4x128xf32>
    %cst_43 = arith.constant 0.000000e+00 : f32
    %121 = vector.broadcast %cst_43 : f32 to vector<4x128xf32>
    %122 = arith.cmpf ogt, %120, %121 : vector<4x128xf32>
    %cst_44 = arith.constant 0.00999999977 : f32
    %123 = vector.broadcast %cst_44 : f32 to vector<4x128xf32>
    %124 = arith.mulf %123, %120 : vector<4x128xf32>
    %125 = arith.select %122, %120, %124 : vector<4x128xi1>, vector<4x128xf32>
    %c126_i32_45 = arith.constant 126 : i32
    %126 = tpu.dynamic_rotate %125 by %c126_i32_45 dim 1 : vector<4x128xf32>, i32 -> vector<4x128xf32>
    %127 = arith.maximumf %125, %126 : vector<4x128xf32>
    %c0_46 = arith.constant 0 : index
    %c0_47 = arith.constant 0 : index
    %128 = vector.load %arg2[%c0_46, %c0_47] : memref<176x48xf32, #tpu.memory_space<vmem>>, vector<128x48xf32>
    %c128 = arith.constant 128 : index
    %c0_48 = arith.constant 0 : index
    %129 = vector.load %arg2[%c128, %c0_48] : memref<176x48xf32, #tpu.memory_space<vmem>>, vector<16x48xf32>
    %c144 = arith.constant 144 : index
    %c0_49 = arith.constant 0 : index
    %130 = vector.load %arg2[%c144, %c0_49] : memref<176x48xf32, #tpu.memory_space<vmem>>, vector<1x48xf32>
    %c152 = arith.constant 152 : index
    %c0_50 = arith.constant 0 : index
    %131 = vector.load %arg2[%c152, %c0_50] : memref<176x48xf32, #tpu.memory_space<vmem>>, vector<1x48xf32>
    %cst_51 = arith.constant dense<0.000000e+00> : vector<4x48xf32>
    %132 = tpu.matmul %127, %128, %cst_51 {dimension_numbers = #tpu.dot_dimension_numbers<[1], [0], [0], [1], [0, 0, 1, 1], [], []>} : vector<4x128xf32>, vector<128x48xf32>, vector<4x48xf32> -> vector<4x48xf32>
    %133 = vector.broadcast %130 : vector<1x48xf32> to vector<4x48xf32>
    %134 = arith.addf %132, %133 : vector<4x48xf32>
    %135 = tpu.iota {dimensions = array<i32: 1>} : vector<1x48xi32>
    %c16_i32 = arith.constant 16 : i32
    %c0_i32_52 = arith.constant 0 : i32
    %136 = arith.cmpi eq, %c16_i32, %c0_i32_52 : i32
    %c1_i32_53 = arith.constant 1 : i32
    %137 = arith.select %136, %c1_i32_53, %c16_i32 : i32
    %138 = vector.broadcast %137 : i32 to vector<1x48xi32>
    %139 = arith.remsi %135, %138 : vector<1x48xi32>
    %c0_i32_54 = arith.constant 0 : i32
    %140 = vector.broadcast %c0_i32_54 : i32 to vector<1x48xi32>
    %141 = arith.cmpi ne, %139, %140 : vector<1x48xi32>
    %c0_i32_55 = arith.constant 0 : i32
    %142 = vector.broadcast %c0_i32_55 : i32 to vector<1x48xi32>
    %143 = arith.cmpi slt, %139, %142 : vector<1x48xi32>
    %c0_i32_56 = arith.constant 0 : i32
    %144 = arith.cmpi slt, %137, %c0_i32_56 : i32
    %145 = vector.broadcast %144 : i1 to vector<1x48xi1>
    %146 = vector.broadcast %145 : vector<1x48xi1> to vector<1x48xi1>
    %147 = arith.xori %143, %146 : vector<1x48xi1>
    %148 = arith.andi %147, %141 : vector<1x48xi1>
    %149 = vector.broadcast %137 : i32 to vector<1x48xi32>
    %150 = arith.addi %139, %149 : vector<1x48xi32>
    %151 = arith.select %148, %150, %139 : vector<1x48xi1>, vector<1x48xi32>
    %c8_i32 = arith.constant 8 : i32
    %152 = vector.broadcast %c8_i32 : i32 to vector<1x48xi32>
    %153 = arith.cmpi slt, %151, %152 : vector<1x48xi32>
    %154 = vector.extract_strided_slice %134 {offsets = [3, 0], sizes = [1, 48], strides = [1, 1]} : vector<4x48xf32> to vector<1x48xf32>
    %155 = vector.extract_strided_slice %134 {offsets = [2, 0], sizes = [1, 48], strides = [1, 1]} : vector<4x48xf32> to vector<1x48xf32>
    %156 = vector.extract_strided_slice %134 {offsets = [1, 0], sizes = [1, 48], strides = [1, 1]} : vector<4x48xf32> to vector<1x48xf32>
    %157 = vector.extract_strided_slice %134 {offsets = [0, 0], sizes = [1, 48], strides = [1, 1]} : vector<4x48xf32> to vector<1x48xf32>
    %158 = tpu.concatenate %154, %155, %156, %157 in 0 : vector<1x48xf32>, vector<1x48xf32>, vector<1x48xf32>, vector<1x48xf32> -> vector<4x48xf32>
    %159 = vector.shape_cast %153 : vector<1x48xi1> to vector<1x48xi1>
    %160 = vector.broadcast %159 : vector<1x48xi1> to vector<4x48xi1>
    %161 = arith.select %160, %134, %158 : vector<4x48xi1>, vector<4x48xf32>
    %cst_57 = arith.constant 0.000000e+00 : f32
    %162 = vector.broadcast %cst_57 : f32 to vector<1x16xf32>
    %cst_58 = arith.constant dense<0.000000e+00> : vector<1x48xf32>
    %163 = tpu.matmul %162, %129, %cst_58 {dimension_numbers = #tpu.dot_dimension_numbers<[1], [0], [0], [1], [0, 0, 1, 1], [], []>} : vector<1x16xf32>, vector<16x48xf32>, vector<1x48xf32> -> vector<1x48xf32>
    %164 = arith.addf %163, %131 : vector<1x48xf32>
    %165 = vector.extract_strided_slice %161 {offsets = [0, 0], sizes = [1, 48], strides = [1, 1]} : vector<4x48xf32> to vector<1x48xf32>
    %166 = vector.extract_strided_slice %165 {offsets = [0, 0], sizes = [1, 16], strides = [1, 1]} : vector<1x48xf32> to vector<1x16xf32>
    %167 = vector.extract_strided_slice %164 {offsets = [0, 0], sizes = [1, 16], strides = [1, 1]} : vector<1x48xf32> to vector<1x16xf32>
    %168 = arith.addf %166, %167 : vector<1x16xf32>
    %169 = arith.negf %168 : vector<1x16xf32>
    %170 = math.exp %169 : vector<1x16xf32>
    %cst_59 = arith.constant 1.000000e+00 : f32
    %171 = vector.broadcast %cst_59 : f32 to vector<1x16xf32>
    %172 = arith.addf %171, %170 : vector<1x16xf32>
    %173 = arith.divf %171, %172 : vector<1x16xf32>
    %174 = vector.extract_strided_slice %165 {offsets = [0, 16], sizes = [1, 16], strides = [1, 1]} : vector<1x48xf32> to vector<1x16xf32>
    %175 = vector.extract_strided_slice %164 {offsets = [0, 16], sizes = [1, 16], strides = [1, 1]} : vector<1x48xf32> to vector<1x16xf32>
    %176 = arith.addf %174, %175 : vector<1x16xf32>
    %177 = arith.negf %176 : vector<1x16xf32>
    %178 = math.exp %177 : vector<1x16xf32>
    %cst_60 = arith.constant 1.000000e+00 : f32
    %179 = vector.broadcast %cst_60 : f32 to vector<1x16xf32>
    %180 = arith.addf %179, %178 : vector<1x16xf32>
    %181 = arith.divf %179, %180 : vector<1x16xf32>
    %182 = vector.extract_strided_slice %165 {offsets = [0, 32], sizes = [1, 16], strides = [1, 1]} : vector<1x48xf32> to vector<1x16xf32>
    %183 = vector.extract_strided_slice %164 {offsets = [0, 32], sizes = [1, 16], strides = [1, 1]} : vector<1x48xf32> to vector<1x16xf32>
    %184 = arith.mulf %173, %183 : vector<1x16xf32>
    %185 = arith.addf %182, %184 : vector<1x16xf32>
    %186 = math.tanh %185 : vector<1x16xf32>
    %cst_61 = arith.constant 1.000000e+00 : f32
    %187 = vector.broadcast %cst_61 : f32 to vector<1x16xf32>
    %188 = arith.subf %187, %181 : vector<1x16xf32>
    %189 = arith.mulf %188, %186 : vector<1x16xf32>
    %190 = arith.mulf %181, %162 : vector<1x16xf32>
    %191 = arith.addf %189, %190 : vector<1x16xf32>
    %cst_62 = arith.constant dense<0.000000e+00> : vector<1x48xf32>
    %192 = tpu.matmul %191, %129, %cst_62 {dimension_numbers = #tpu.dot_dimension_numbers<[1], [0], [0], [1], [0, 0, 1, 1], [], []>} : vector<1x16xf32>, vector<16x48xf32>, vector<1x48xf32> -> vector<1x48xf32>
    %193 = arith.addf %192, %131 : vector<1x48xf32>
    %194 = vector.extract_strided_slice %161 {offsets = [1, 0], sizes = [1, 48], strides = [1, 1]} : vector<4x48xf32> to vector<1x48xf32>
    %195 = vector.extract_strided_slice %194 {offsets = [0, 0], sizes = [1, 16], strides = [1, 1]} : vector<1x48xf32> to vector<1x16xf32>
    %196 = vector.extract_strided_slice %193 {offsets = [0, 0], sizes = [1, 16], strides = [1, 1]} : vector<1x48xf32> to vector<1x16xf32>
    %197 = arith.addf %195, %196 : vector<1x16xf32>
    %198 = arith.negf %197 : vector<1x16xf32>
    %199 = math.exp %198 : vector<1x16xf32>
    %cst_63 = arith.constant 1.000000e+00 : f32
    %200 = vector.broadcast %cst_63 : f32 to vector<1x16xf32>
    %201 = arith.addf %200, %199 : vector<1x16xf32>
    %202 = arith.divf %200, %201 : vector<1x16xf32>
    %203 = vector.extract_strided_slice %194 {offsets = [0, 16], sizes = [1, 16], strides = [1, 1]} : vector<1x48xf32> to vector<1x16xf32>
    %204 = vector.extract_strided_slice %193 {offsets = [0, 16], sizes = [1, 16], strides = [1, 1]} : vector<1x48xf32> to vector<1x16xf32>
    %205 = arith.addf %203, %204 : vector<1x16xf32>
    %206 = arith.negf %205 : vector<1x16xf32>
    %207 = math.exp %206 : vector<1x16xf32>
    %cst_64 = arith.constant 1.000000e+00 : f32
    %208 = vector.broadcast %cst_64 : f32 to vector<1x16xf32>
    %209 = arith.addf %208, %207 : vector<1x16xf32>
    %210 = arith.divf %208, %209 : vector<1x16xf32>
    %211 = vector.extract_strided_slice %194 {offsets = [0, 32], sizes = [1, 16], strides = [1, 1]} : vector<1x48xf32> to vector<1x16xf32>
    %212 = vector.extract_strided_slice %193 {offsets = [0, 32], sizes = [1, 16], strides = [1, 1]} : vector<1x48xf32> to vector<1x16xf32>
    %213 = arith.mulf %202, %212 : vector<1x16xf32>
    %214 = arith.addf %211, %213 : vector<1x16xf32>
    %215 = math.tanh %214 : vector<1x16xf32>
    %cst_65 = arith.constant 1.000000e+00 : f32
    %216 = vector.broadcast %cst_65 : f32 to vector<1x16xf32>
    %217 = arith.subf %216, %210 : vector<1x16xf32>
    %218 = arith.mulf %217, %215 : vector<1x16xf32>
    %219 = arith.mulf %210, %191 : vector<1x16xf32>
    %220 = arith.addf %218, %219 : vector<1x16xf32>
    %cst_66 = arith.constant dense<0.000000e+00> : vector<1x48xf32>
    %221 = tpu.matmul %220, %129, %cst_66 {dimension_numbers = #tpu.dot_dimension_numbers<[1], [0], [0], [1], [0, 0, 1, 1], [], []>} : vector<1x16xf32>, vector<16x48xf32>, vector<1x48xf32> -> vector<1x48xf32>
    %222 = arith.addf %221, %131 : vector<1x48xf32>
    %223 = vector.extract_strided_slice %161 {offsets = [2, 0], sizes = [1, 48], strides = [1, 1]} : vector<4x48xf32> to vector<1x48xf32>
    %224 = vector.extract_strided_slice %223 {offsets = [0, 0], sizes = [1, 16], strides = [1, 1]} : vector<1x48xf32> to vector<1x16xf32>
    %225 = vector.extract_strided_slice %222 {offsets = [0, 0], sizes = [1, 16], strides = [1, 1]} : vector<1x48xf32> to vector<1x16xf32>
    %226 = arith.addf %224, %225 : vector<1x16xf32>
    %227 = arith.negf %226 : vector<1x16xf32>
    %228 = math.exp %227 : vector<1x16xf32>
    %cst_67 = arith.constant 1.000000e+00 : f32
    %229 = vector.broadcast %cst_67 : f32 to vector<1x16xf32>
    %230 = arith.addf %229, %228 : vector<1x16xf32>
    %231 = arith.divf %229, %230 : vector<1x16xf32>
    %232 = vector.extract_strided_slice %223 {offsets = [0, 16], sizes = [1, 16], strides = [1, 1]} : vector<1x48xf32> to vector<1x16xf32>
    %233 = vector.extract_strided_slice %222 {offsets = [0, 16], sizes = [1, 16], strides = [1, 1]} : vector<1x48xf32> to vector<1x16xf32>
    %234 = arith.addf %232, %233 : vector<1x16xf32>
    %235 = arith.negf %234 : vector<1x16xf32>
    %236 = math.exp %235 : vector<1x16xf32>
    %cst_68 = arith.constant 1.000000e+00 : f32
    %237 = vector.broadcast %cst_68 : f32 to vector<1x16xf32>
    %238 = arith.addf %237, %236 : vector<1x16xf32>
    %239 = arith.divf %237, %238 : vector<1x16xf32>
    %240 = vector.extract_strided_slice %223 {offsets = [0, 32], sizes = [1, 16], strides = [1, 1]} : vector<1x48xf32> to vector<1x16xf32>
    %241 = vector.extract_strided_slice %222 {offsets = [0, 32], sizes = [1, 16], strides = [1, 1]} : vector<1x48xf32> to vector<1x16xf32>
    %242 = arith.mulf %231, %241 : vector<1x16xf32>
    %243 = arith.addf %240, %242 : vector<1x16xf32>
    %244 = math.tanh %243 : vector<1x16xf32>
    %cst_69 = arith.constant 1.000000e+00 : f32
    %245 = vector.broadcast %cst_69 : f32 to vector<1x16xf32>
    %246 = arith.subf %245, %239 : vector<1x16xf32>
    %247 = arith.mulf %246, %244 : vector<1x16xf32>
    %248 = arith.mulf %239, %220 : vector<1x16xf32>
    %249 = arith.addf %247, %248 : vector<1x16xf32>
    %cst_70 = arith.constant dense<0.000000e+00> : vector<1x48xf32>
    %250 = tpu.matmul %249, %129, %cst_70 {dimension_numbers = #tpu.dot_dimension_numbers<[1], [0], [0], [1], [0, 0, 1, 1], [], []>} : vector<1x16xf32>, vector<16x48xf32>, vector<1x48xf32> -> vector<1x48xf32>
    %251 = arith.addf %250, %131 : vector<1x48xf32>
    %252 = vector.extract_strided_slice %161 {offsets = [3, 0], sizes = [1, 48], strides = [1, 1]} : vector<4x48xf32> to vector<1x48xf32>
    %253 = vector.extract_strided_slice %252 {offsets = [0, 0], sizes = [1, 16], strides = [1, 1]} : vector<1x48xf32> to vector<1x16xf32>
    %254 = vector.extract_strided_slice %251 {offsets = [0, 0], sizes = [1, 16], strides = [1, 1]} : vector<1x48xf32> to vector<1x16xf32>
    %255 = arith.addf %253, %254 : vector<1x16xf32>
    %256 = arith.negf %255 : vector<1x16xf32>
    %257 = math.exp %256 : vector<1x16xf32>
    %cst_71 = arith.constant 1.000000e+00 : f32
    %258 = vector.broadcast %cst_71 : f32 to vector<1x16xf32>
    %259 = arith.addf %258, %257 : vector<1x16xf32>
    %260 = arith.divf %258, %259 : vector<1x16xf32>
    %261 = vector.extract_strided_slice %252 {offsets = [0, 16], sizes = [1, 16], strides = [1, 1]} : vector<1x48xf32> to vector<1x16xf32>
    %262 = vector.extract_strided_slice %251 {offsets = [0, 16], sizes = [1, 16], strides = [1, 1]} : vector<1x48xf32> to vector<1x16xf32>
    %263 = arith.addf %261, %262 : vector<1x16xf32>
    %264 = arith.negf %263 : vector<1x16xf32>
    %265 = math.exp %264 : vector<1x16xf32>
    %cst_72 = arith.constant 1.000000e+00 : f32
    %266 = vector.broadcast %cst_72 : f32 to vector<1x16xf32>
    %267 = arith.addf %266, %265 : vector<1x16xf32>
    %268 = arith.divf %266, %267 : vector<1x16xf32>
    %269 = vector.extract_strided_slice %252 {offsets = [0, 32], sizes = [1, 16], strides = [1, 1]} : vector<1x48xf32> to vector<1x16xf32>
    %270 = vector.extract_strided_slice %251 {offsets = [0, 32], sizes = [1, 16], strides = [1, 1]} : vector<1x48xf32> to vector<1x16xf32>
    %271 = arith.mulf %260, %270 : vector<1x16xf32>
    %272 = arith.addf %269, %271 : vector<1x16xf32>
    %273 = math.tanh %272 : vector<1x16xf32>
    %cst_73 = arith.constant 1.000000e+00 : f32
    %274 = vector.broadcast %cst_73 : f32 to vector<1x16xf32>
    %275 = arith.subf %274, %268 : vector<1x16xf32>
    %276 = arith.mulf %275, %273 : vector<1x16xf32>
    %277 = arith.mulf %268, %249 : vector<1x16xf32>
    %278 = arith.addf %276, %277 : vector<1x16xf32>
    %279 = vector.extract_strided_slice %191 {offsets = [0, 0], sizes = [1, 8], strides = [1, 1]} : vector<1x16xf32> to vector<1x8xf32>
    %280 = vector.extract_strided_slice %278 {offsets = [0, 8], sizes = [1, 8], strides = [1, 1]} : vector<1x16xf32> to vector<1x8xf32>
    %281 = tpu.concatenate %279, %280 in 1 : vector<1x8xf32>, vector<1x8xf32> -> vector<1x16xf32>
    %282 = vector.extract_strided_slice %220 {offsets = [0, 0], sizes = [1, 8], strides = [1, 1]} : vector<1x16xf32> to vector<1x8xf32>
    %283 = vector.extract_strided_slice %249 {offsets = [0, 8], sizes = [1, 8], strides = [1, 1]} : vector<1x16xf32> to vector<1x8xf32>
    %284 = tpu.concatenate %282, %283 in 1 : vector<1x8xf32>, vector<1x8xf32> -> vector<1x16xf32>
    %285 = vector.extract_strided_slice %249 {offsets = [0, 0], sizes = [1, 8], strides = [1, 1]} : vector<1x16xf32> to vector<1x8xf32>
    %286 = vector.extract_strided_slice %220 {offsets = [0, 8], sizes = [1, 8], strides = [1, 1]} : vector<1x16xf32> to vector<1x8xf32>
    %287 = tpu.concatenate %285, %286 in 1 : vector<1x8xf32>, vector<1x8xf32> -> vector<1x16xf32>
    %288 = vector.extract_strided_slice %278 {offsets = [0, 0], sizes = [1, 8], strides = [1, 1]} : vector<1x16xf32> to vector<1x8xf32>
    %289 = vector.extract_strided_slice %191 {offsets = [0, 8], sizes = [1, 8], strides = [1, 1]} : vector<1x16xf32> to vector<1x8xf32>
    %290 = tpu.concatenate %288, %289 in 1 : vector<1x8xf32>, vector<1x8xf32> -> vector<1x16xf32>
    %291 = tpu.concatenate %281, %284, %287, %290 in 0 : vector<1x16xf32>, vector<1x16xf32>, vector<1x16xf32>, vector<1x16xf32> -> vector<4x16xf32>
    %c0_74 = arith.constant 0 : index
    %c0_75 = arith.constant 0 : index
    %c0_76 = arith.constant 0 : index
    %292 = vector.load %arg3[%c0_74, %c0_75, %c0_76] : memref<1x4x16xf32, #tpu.memory_space<vmem>>, vector<1x4x16xf32>
    %293 = vector.shape_cast %292 : vector<1x4x16xf32> to vector<4x16xf32>
    %294 = vector.shape_cast %291 : vector<4x16xf32> to vector<1x4x16xf32>
    tpu.vector_store %arg3[%c0_74, %c0_75, %c0_76], %294 {strides = array<i32>} : memref<1x4x16xf32, #tpu.memory_space<vmem>>, vector<1x4x16xf32>,
    return
  }
  func.func @transform_0(%arg0: i32) -> (i32, i32, i32) {
    %c0_i32 = arith.constant 0 : i32
    %c0_i32_0 = arith.constant 0 : i32
    %c0_i32_1 = arith.constant 0 : i32
    return %arg0, %c0_i32, %c0_i32_0 : i32, i32, i32
  }
  func.func @transform_1(%arg0: i32) -> (i32, i32) {
    %c0_i32 = arith.constant 0 : i32
    %c0_i32_0 = arith.constant 0 : i32
    %c0_i32_1 = arith.constant 0 : i32
    return %c0_i32, %c0_i32_0 : i32, i32
  }
  func.func @transform_2(%arg0: i32) -> (i32, i32, i32) {
    %c0_i32 = arith.constant 0 : i32
    %c0_i32_0 = arith.constant 0 : i32
    %c0_i32_1 = arith.constant 0 : i32
    return %arg0, %c0_i32, %c0_i32_0 : i32, i32, i32
  }
}

</mosaic_0001>

<llo_original>
// kernel: hnet_forward.1
$region0: #{hnet_forward.1}
  #allocation0 [shape = 'u32[]', space=smem, size = 0x4, offset = 0x4, fixed_abs, tag = 'smem constant byte address 0x4 - core index']
  #allocation1 [shape = 'u32[144,128]{1,0:T(1,128)}', space=vmem, size = 0x12000, scoped, tag = 'internal scratch']
  %s0 = inlined_call_operand.vmem [shape: f32[8,1,128], index: 0, kind: input, shape index: {}]
  %s1 = inlined_call_operand.vmem [shape: f32[176,48], index: 1, kind: input, shape index: {}]
  %s2 = inlined_call_operand.vmem [shape: f32[8,4,16], index: 2, kind: output, shape index: {}]
  %s3 = sld [smem:[#allocation0]]
  $region41: #{hnet_forward.1} parent=0
    _
  %s5 = ssub.s32 1, %s3
  %s6 = scalar_select 0, %s5, %s3
  loop: start=0, step=1, limit=10
  $region2: #{hnet_forward.1} parent=0 // loop_pre_header
    _
  $region3: #{hnet_forward.1} parent=0 // loop_header
    %s8 = sphi 0, %s12
    %p9 = scmp.ge.s32.totalorder %s8, 10
    %s18 = sphi 0, %s20
    %s21 = sphi 0, %s18
    %s22 = sphi 0, %s21
    %s38 = sphi 0, %s22
    %s42 = sphi 0, %s42
    %s44 = sphi 0, %s42
    %s45 = sphi 0, %s44
    %s59 = sphi 0, %s45
    %s65 = sphi 0, %s67
    %s68 = sphi 0, %s65
    %s69 = sphi 0, %s68
    %s85 = sphi 0, %s69
  $region4: #{hnet_forward.1} parent=0 // loop_header_branch
    %11 = sbr.rel (%p9) target = $region8
  $region5: #{hnet_forward.1} parent=0 // loop_body
    %s13 = ssub.s32 %s8, 1
    %s14 = ssub.s32 %s8, 2
    %s15 = sadd.s32 %s8, 1
    %s16 = ssub.s32 %s8, %s15
    %p17 = scmp.eq.s32.totalorder %s16, 0
    %s19 = sadd.s32 %s18, 1
    %s20 = scalar_select %p17, %s18, %s19
    %p23 = pneg %p17
    %p24 = scmp.eq.s32.totalorder %s8, 7
    %p25 = por %p23, %p24
    %p26 = scmp.ne.s32.totalorder %s18, %s21
    %p27 = scmp.eq.s32.totalorder %s8, 0
    %p28 = por %p26, %p27
    %p29 = scmp.ne.s32.totalorder %s18, %s21
    %p30 = scmp.eq.s32.totalorder %s13, 7
    %p31 = por %p29, %p30
    %p32 = scmp.ne.s32.totalorder %s21, %s22
    %p33 = scmp.eq.s32.totalorder %s13, 0
    %p34 = por %p32, %p33
    %p35 = scmp.ne.s32.totalorder %s21, %s22
    %p36 = scmp.eq.s32.totalorder %s14, 7
    %p37 = por %p35, %p36
    %p39 = scmp.ne.s32.totalorder %s22, %s38
    %p40 = scmp.eq.s32.totalorder %s14, 0
    %p41 = por %p39, %p40
    %s43 = sadd.s32 %s42, 1
    %p46 = scmp.eq.s32.totalorder %s8, 7
    %p47 = scmp.ne.s32.totalorder %s42, %s44
    %p48 = scmp.eq.s32.totalorder %s8, 0
    %p49 = por %p47, %p48
    %p50 = scmp.ne.s32.totalorder %s42, %s44
    %p51 = scmp.eq.s32.totalorder %s13, 7
    %p52 = por %p50, %p51
    %p53 = scmp.ne.s32.totalorder %s44, %s45
    %p54 = scmp.eq.s32.totalorder %s13, 0
    %p55 = por %p53, %p54
    %p56 = scmp.ne.s32.totalorder %s44, %s45
    %p57 = scmp.eq.s32.totalorder %s14, 7
    %p58 = por %p56, %p57
    %p60 = scmp.ne.s32.totalorder %s45, %s59
    %p61 = scmp.eq.s32.totalorder %s14, 0
    %p62 = por %p60, %p61
    %s63 = ssub.s32 %s8, %s15
    %p64 = scmp.eq.s32.totalorder %s63, 0
    %s66 = sadd.s32 %s65, 1
    %s67 = scalar_select %p64, %s65, %s66
    %p70 = pneg %p64
    %p71 = scmp.eq.s32.totalorder %s8, 7
    %p72 = por %p70, %p71
    %p73 = scmp.ne.s32.totalorder %s65, %s68
    %p74 = scmp.eq.s32.totalorder %s8, 0
    %p75 = por %p73, %p74
    %p76 = scmp.ne.s32.totalorder %s65, %s68
    %p77 = scmp.eq.s32.totalorder %s13, 7
    %p78 = por %p76, %p77
    %p79 = scmp.ne.s32.totalorder %s68, %s69
    %p80 = scmp.eq.s32.totalorder %s13, 0
    %p81 = por %p79, %p80
    %p82 = scmp.ne.s32.totalorder %s68, %s69
    %p83 = scmp.eq.s32.totalorder %s14, 7
    %p84 = por %p82, %p83
    %p86 = scmp.ne.s32.totalorder %s69, %s85
    %p87 = scmp.eq.s32.totalorder %s14, 0
    %p88 = por %p86, %p87
    %p89 = scmp.le.s32.totalorder 1, %s8
    %p90 = scmp.lt.s32.totalorder %s8, 9
    %p91 = pnand %p89, %p90
    %p92 = pneg %p91
    // Predicated region
    $region9: #{hnet_forward.1} parent=5 // pred_check
      _
    $region10: #{hnet_forward.1} parent=5 // pred_check_branch
      %94 = sbr.rel (%p91) target = $region12
    $region11: #{hnet_forward.1} parent=5 // pred_region
      %s95 = ssub.s32 %s8, 1
      // Predicated region
      $region13: #{hnet_forward.1} parent=11 // pred_check
        %p96 = pneg %p55
      $region14: #{hnet_forward.1} parent=11 // pred_check_branch
        %98 = sbr.rel (%p96) target = $region16
      $region15: #{hnet_forward.1} parent=11 // pred_region
        _
      $region16: #{hnet_forward.1} parent=11 // pred_fallthru
        _
    $region12: #{hnet_forward.1} parent=5 // pred_fallthru
      _
    %p99 = scmp.lt.s32.totalorder %s8, 8
    // Predicated region
    $region17: #{hnet_forward.1} parent=5 // pred_check
      %p100 = pneg %p99
    $region18: #{hnet_forward.1} parent=5 // pred_check_branch
      %102 = sbr.rel (%p100) target = $region20
    $region19: #{hnet_forward.1} parent=5 // pred_region
      // Predicated region
      $region21: #{hnet_forward.1} parent=19 // pred_check
        %p103 = pneg %p28
      $region22: #{hnet_forward.1} parent=19 // pred_check_branch
        %105 = sbr.rel (%p103) target = $region24
      $region23: #{hnet_forward.1} parent=19 // pred_region
        %p106 = scmp.lt.s32.totalorder %s8, 7
        %s107 = scalar_select %p106, %s8, 7
        %s108 = scalar_lea.vmem %s0, %s107
      $region24: #{hnet_forward.1} parent=19 // pred_fallthru
        _
    $region20: #{hnet_forward.1} parent=5 // pred_fallthru
      _
    %p109 = scmp.le.s32.totalorder 1, %s8
    %p110 = scmp.lt.s32.totalorder %s8, 9
    %p111 = pnand %p109, %p110
    %p112 = pneg %p111
    // Predicated region
    $region25: #{hnet_forward.1} parent=5 // pred_check
      _
    $region26: #{hnet_forward.1} parent=5 // pred_check_branch
      %114 = sbr.rel (%p111) target = $region28
    $region27: #{hnet_forward.1} parent=5 // pred_region
      %s115 = ssub.s32 %s8, 1
      %p116 = scmp.lt.s32.totalorder %s13, 7
      %s117 = scalar_select %p116, %s13, 7
      %s118 = scalar_lea.vmem %s0, %s117
      %p119 = pneg %p34
      %p120 = pneg %p31
      %p121 = pneg %p55
      %p122 = pneg %p52
      %p123 = pneg %p81
      %p124 = pneg %p78
      %p125 = scmp.lt.s32.totalorder %s13, 7
      %s126 = scalar_select %p125, %s13, 7
      %s127 = smul.addr %s126, 4
      %s128 = scalar_lea.vmem %s2, %s127
      %p129 = scmp.lt.s32.totalorder %s13, 7
      %s130 = scalar_select %p129, %s13, 7
      %s131 = scalar_lea.vmem %s0, %s130
      %p132 = scmp.lt.s32.totalorder %s13, 7
      %s133 = scalar_select %p132, %s13, 7
      %s134 = smul.addr %s133, 4
      %s135 = scalar_lea.vmem %s2, %s134
      %v136 = vlaneseq
      %v137 = vand.u32 %v136, 127
      %vm138 = vcmp.ge.s32.totalorder %v137, 4
      %vm139 = vcmp.ge.s32.totalorder %v137, 2
      %vm140 = vcmp.ge.s32.totalorder %v137, 1
      %vm141 = vcmp.lt.s32.totalorder %v137, 127
      %vm142 = vcmp.lt.s32.totalorder %v137, 126
      %vm143 = vcmp.lt.s32.totalorder %v137, 124
      %v144 = vld [vmem:[%s131] sm:$0x1]
      %v145 = vld [vmem:[%s1 + $0xa0] sm:$0xff]
      %146 = vrot.lane.b32.xlu0 %v144, 2
      %v147 = vpop.permute.xlu0 %146
      %v148 = vsel %vm139, %v147, 0.0
      %149 = vrot.lane.b32.xlu0 %v144, 1
      %v150 = vpop.permute.xlu0 %149
      %v151 = vsel %vm140, %v150, 0.0
      %152 = vrot.lane.b32.xlu0 %v144, 127
      %v153 = vpop.permute.xlu0 %152
      %v154 = vsel %vm141, %v153, 0.0
      %155 = vrot.lane.b32.xlu0 %v144, 126
      %v156 = vpop.permute.xlu0 %155
      %v157 = vsel %vm142, %v156, 0.0
      %v159 = vrot.slane %v151, 7
      %v162 = vlaneseq
      %v163 = vshrl.u32 %v162, 7
      %v164 = vsub.s32 0, %v163
      %v165 = vrot.slane %v144, %v164
      %v168 = vrot.slane %v154, 5
      %v171 = vrot.slane %v157, 4
      %vm173 = vcmask 1040384
      %v174 = vsel %vm173, %v148, %v159
      %vm175 = vcmask 1041408
      %v176 = vsel %vm175, %v174, %v165
      %vm177 = vcmask 1042432
      %v178 = vsel %vm177, %v176, %v168
      %vm179 = vcmask 1043456
      %v180 = vsel %vm179, %v178, %v171
      %vm181 = vcmask 1044480
      %v182 = vsel %vm181, %v180, 0.0
      %vm183 = vcmask 1045504
      %v184 = vsel %vm183, %v182, 0.0
      %vm185 = vcmask 1046528
      %v186 = vsel %vm185, %v184, 0.0
      %vm187 = vcmask 64512
      %v189 = vsel %vm187, %v145, 0
      %191 = vmatprep.subr.mxu0 0.0
      %192 = vmatpush1.msra.mxu0 %v186
      %193 = vmatprep.subr.mxu0 0.0
      %194 = vmatpush1.msra.mxu0 0.0
      %195 = vmatprep.subr.mxu0 0.0
      %196 = vmatpush1.msra.mxu0 0.0
      %197 = vmatprep.subr.mxu0 0.0
      %198 = vmatpush1.msra.mxu0 0.0
      %199 = vmatprep.subr.mxu0 0.0
      %200 = vmatpush1.msra.mxu0 0.0
      %201 = vmatprep.subr.mxu0 0.0
      %202 = vmatpush1.msra.mxu0 0.0
      %203 = vmatprep.subr.mxu0 0.0
      %204 = vmatpush1.msra.mxu0 0.0
      %205 = vmatprep.subr.mxu0 0.0
      %206 = vmatpush1.msra.mxu0 0.0
      %207 = vmatprep.subr.mxu0 0.0
      %208 = vmatpush1.msra.mxu0 0.0
      %209 = vmatprep.subr.mxu0 0.0
      %210 = vmatpush1.msra.mxu0 0.0
      %211 = vmatprep.subr.mxu0 0.0
      %212 = vmatpush1.msra.mxu0 0.0
      %213 = vmatprep.subr.mxu0 0.0
      %214 = vmatpush1.msra.mxu0 0.0
      %215 = vmatprep.subr.mxu0 0.0
      %216 = vmatpush1.msra.mxu0 0.0
      %217 = vmatprep.subr.mxu0 0.0
      %218 = vmatpush1.msra.mxu0 0.0
      %219 = vmatprep.subr.mxu0 0.0
      %220 = vmatpush1.msra.mxu0 0.0
      %221 = vmatprep.subr.mxu0 0.0
      %222 = vmatpush1.msra.mxu0 0.0
      %223 = vmatprep.subr.mxu0 0.0
      %224 = vmatpush1.msra.mxu0 0.0
      %225 = vmatprep.subr.mxu0 0.0
      %226 = vmatpush1.msra.mxu0 0.0
      %227 = vmatprep.subr.mxu0 0.0
      %228 = vmatpush1.msra.mxu0 0.0
      %229 = vmatprep.subr.mxu0 0.0
      %230 = vmatpush1.msra.mxu0 0.0
      %231 = vmatprep.subr.mxu0 0.0
      %232 = vmatpush1.msra.mxu0 0.0
      %233 = vmatprep.subr.mxu0 0.0
      %234 = vmatpush1.msra.mxu0 0.0
      %235 = vmatprep.subr.mxu0 0.0
      %236 = vmatpush1.msra.mxu0 0.0
      %237 = vmatprep.subr.mxu0 0.0
      %238 = vmatpush1.msra.mxu0 0.0
      %239 = vmatprep.subr.mxu0 0.0
      %240 = vmatpush1.msra.mxu0 0.0
      %241 = vmatprep.subr.mxu0 0.0
      %242 = vmatpush1.msra.mxu0 0.0
      %243 = vmatprep.subr.mxu0 0.0
      %244 = vmatpush1.msra.mxu0 0.0
      %245 = vmatprep.subr.mxu0 0.0
      %246 = vmatpush1.msra.mxu0 0.0
      %247 = vmatprep.subr.mxu0 0.0
      %248 = vmatpush1.msra.mxu0 0.0
      %249 = vmatprep.subr.mxu0 0.0
      %250 = vmatpush1.msra.mxu0 0.0
      %251 = vmatprep.subr.mxu0 0.0
      %252 = vmatpush1.msra.mxu0 0.0
      %253 = vmatprep.subr.mxu0 0.0
      %254 = vmatpush1.msra.mxu0 0.0
      %255 = vmatprep.mubr.f32.mxu0 0.0
      %256 = vmatmul.mubr.f32.gmra.mrb[0].mxu0 %v189
      %v257 = vpop.f32.mrb[0].mxu0
      %v258 = vadd.f32 0.0, %v257
      %v259 = vpop.f32.mrb[0].mxu0
      %260 = vdwg.mxu0
      %261 = vadd.xlane.f32.xlu0 %v258
      %v262 = vpop.xlane.xlu0 %261
      %v263 = vrcp.pop 128.0
      %v264 = vmul.f32 %v262, %v263
      %v265 = vsub.f32 %v258, %v264
      %v266 = vmul.f32 %v265, %v265
      %267 = vadd.xlane.f32.xlu0 %v266
      %v268 = vpop.xlane.xlu0 %267
      %v269 = vmul.f32 %v268, %v263
      %v270 = vadd.f32 %v269, 0.0001
      %v271 = vrsqrt.pop %v270
      %v272 = vmul.f32 %v265, %v271
      %vm273 = vcmp.gt.f32.partialorder %v272, 0.0
      %v274 = vmul.f32 %v272, 0.01
      %v275 = vsel %vm273, %v272, %v274
      %276 = vrot.lane.b32.xlu0 %v275, 127
      %v277 = vpop.permute.xlu0 %276
      %v278 = vmax.f32 %v275, %v277
      %v279 = vld [vmem:[%s1 + $0xa8] sm:$0xf]
      %280 = vrot.lane.b32.xlu0 %v278, 4
      %v281 = vpop.permute.xlu0 %280
      %v282 = vsel %vm138, 1, 0
      %vm283 = vcmp.eq.s32.totalorder %v282, 1
      %v284 = vsel %vm283, %v281, 0.0
      %285 = vrot.lane.b32.xlu0 %v278, 2
      %v286 = vpop.permute.xlu0 %285
      %v287 = vsel %vm139, 1, 0
      %vm288 = vcmp.eq.s32.totalorder %v287, 1
      %v289 = vsel %vm288, %v286, 0.0
      %290 = vrot.lane.b32.xlu0 %v278, 126
      %v291 = vpop.permute.xlu0 %290
      %v292 = vsel %vm142, 1, 0
      %vm293 = vcmp.eq.s32.totalorder %v292, 1
      %v294 = vsel %vm293, %v291, 0.0
      %295 = vrot.lane.b32.xlu0 %v278, 124
      %v296 = vpop.permute.xlu0 %295
      %v297 = vsel %vm143, 1, 0
      %vm298 = vcmp.eq.s32.totalorder %v297, 1
      %v299 = vsel %vm298, %v296, 0.0
      %vm300 = vcmask 326656
      %v302 = vsel %vm300, %v279, 0
      %304 = vmatprep.subr.mxu0 0.0
      %305 = vmatpush1.msra.mxu0 %v284
      %306 = vmatprep.subr.mxu0 0.0
      %307 = vmatpush1.msra.mxu0 %v289
      %308 = vmatprep.subr.mxu0 0.0
      %309 = vmatpush1.msra.mxu0 %v278
      %310 = vmatprep.subr.mxu0 0.0
      %311 = vmatpush1.msra.mxu0 %v294
      %312 = vmatprep.subr.mxu0 0.0
      %313 = vmatpush1.msra.mxu0 %v299
      %314 = vmatprep.subr.mxu0 0.0
      %315 = vmatpush1.msra.mxu0 0.0
      %316 = vmatprep.subr.mxu0 0.0
      %317 = vmatpush1.msra.mxu0 0.0
      %318 = vmatprep.subr.mxu0 0.0
      %319 = vmatpush1.msra.mxu0 0.0
      %320 = vmatprep.subr.mxu0 0.0
      %321 = vmatpush1.msra.mxu0 0.0
      %322 = vmatprep.subr.mxu0 0.0
      %323 = vmatpush1.msra.mxu0 0.0
      %324 = vmatprep.subr.mxu0 0.0
      %325 = vmatpush1.msra.mxu0 0.0
      %326 = vmatprep.subr.mxu0 0.0
      %327 = vmatpush1.msra.mxu0 0.0
      %328 = vmatprep.subr.mxu0 0.0
      %329 = vmatpush1.msra.mxu0 0.0
      %330 = vmatprep.subr.mxu0 0.0
      %331 = vmatpush1.msra.mxu0 0.0
      %332 = vmatprep.subr.mxu0 0.0
      %333 = vmatpush1.msra.mxu0 0.0
      %334 = vmatprep.subr.mxu0 0.0
      %335 = vmatpush1.msra.mxu0 0.0
      %336 = vmatprep.subr.mxu0 0.0
      %337 = vmatpush1.msra.mxu0 0.0
      %338 = vmatprep.subr.mxu0 0.0
      %339 = vmatpush1.msra.mxu0 0.0
      %340 = vmatprep.subr.mxu0 0.0
      %341 = vmatpush1.msra.mxu0 0.0
      %342 = vmatprep.subr.mxu0 0.0
      %343 = vmatpush1.msra.mxu0 0.0
      %344 = vmatprep.subr.mxu0 0.0
      %345 = vmatpush1.msra.mxu0 0.0
      %346 = vmatprep.subr.mxu0 0.0
      %347 = vmatpush1.msra.mxu0 0.0
      %348 = vmatprep.subr.mxu0 0.0
      %349 = vmatpush1.msra.mxu0 0.0
      %350 = vmatprep.subr.mxu0 0.0
      %351 = vmatpush1.msra.mxu0 0.0
      %352 = vmatprep.subr.mxu0 0.0
      %353 = vmatpush1.msra.mxu0 0.0
      %354 = vmatprep.subr.mxu0 0.0
      %355 = vmatpush1.msra.mxu0 0.0
      %356 = vmatprep.subr.mxu0 0.0
      %357 = vmatpush1.msra.mxu0 0.0
      %358 = vmatprep.subr.mxu0 0.0
      %359 = vmatpush1.msra.mxu0 0.0
      %360 = vmatprep.subr.mxu0 0.0
      %361 = vmatpush1.msra.mxu0 0.0
      %362 = vmatprep.subr.mxu0 0.0
      %363 = vmatpush1.msra.mxu0 0.0
      %364 = vmatprep.subr.mxu0 0.0
      %365 = vmatpush1.msra.mxu0 0.0
      %366 = vmatprep.subr.mxu0 0.0
      %367 = vmatpush1.msra.mxu0 0.0
      %368 = vmatprep.mubr.f32.mxu0 0.0
      %369 = vmatmul.mubr.f32.gmra.mrb[0].mxu0 %v302
      %v370 = vpop.f32.mrb[0].mxu0
      %v371 = vadd.f32 0.0, %v370
      %v372 = vpop.f32.mrb[0].mxu0
      %373 = vdwg.mxu0
      %vm374 = vcmp.lt.s32.totalorder %v137, 0
      %v375 = vsub.s32 0, %v137
      %v376 = vsel %vm374, %v375, %v137
      %v377 = vshrl.u32 %v376, 1
      %v378 = vand.u32 %v376, 1
      %v379 = vsub.s32 0, %v378
      %v380 = vsel %vm374, %v379, %v378
      %vm381 = vcmp.ne.s32.totalorder %v380, 0
      %vm382 = vcmp.lt.s32.totalorder %v380, 0
      %vm383 = vmand %vm382, %vm381
      %v384 = vadd.s32 %v380, 2
      %v385 = vsel %vm383, %v384, %v380
      %vm386 = vcmp.eq.s32.totalorder %v385, 0
      %v387 = vsel %vm386, 1, 0
      %vm388 = vcmp.eq.s32.totalorder %v387, 1
      %v389 = vsel %vm388, %v371, 0.0
      %v390 = vsel %vm179, %v389, 0.0
      %391 = vadd.xlane.f32.xlu0 %v390
      %v392 = vpop.xlane.xlu0 %391
      %v393 = vmul.f32 %v392, 0.015625
      %v394 = vsub.f32 %v371, %v393
      %v395 = vmul.f32 %v394, %v394
      %v396 = vsel %vm388, %v395, 0.0
      %v397 = vsel %vm179, %v396, 0.0
      %398 = vadd.xlane.f32.xlu0 %v397
      %v399 = vpop.xlane.xlu0 %398
      %v400 = vmul.f32 %v399, 0.015625
      %v401 = vadd.f32 %v400, 0.0001
      %v402 = vrsqrt.pop %v401
      %v403 = vmul.f32 %v394, %v402
      %vm404 = vcmp.gt.f32.partialorder %v403, 0.0
      %v405 = vmul.f32 %v403, 0.01
      %v406 = vsel %vm404, %v403, %v405
      %407 = vrot.lane.b32.xlu0 %v406, 126
      %v408 = vpop.permute.xlu0 %407
      %v409 = vmax.f32 %v406, %v408
      %v410 = vld [vmem:[%s1] sm:$0xff]
      %v411 = vld [vmem:[%s1 + $0x8] sm:$0xff]
      %v412 = vld [vmem:[%s1 + $0x10] sm:$0xff]
      %v413 = vld [vmem:[%s1 + $0x18] sm:$0xff]
      %v414 = vld [vmem:[%s1 + $0x20] sm:$0xff]
      %v415 = vld [vmem:[%s1 + $0x28] sm:$0xff]
      %v416 = vld [vmem:[%s1 + $0x30] sm:$0xff]
      %v417 = vld [vmem:[%s1 + $0x38] sm:$0xff]
      %v418 = vld [vmem:[%s1 + $0x40] sm:$0xff]
      %v419 = vld [vmem:[%s1 + $0x48] sm:$0xff]
      %v420 = vld [vmem:[%s1 + $0x50] sm:$0xff]
      %v421 = vld [vmem:[%s1 + $0x58] sm:$0xff]
      %v422 = vld [vmem:[%s1 + $0x60] sm:$0xff]
      %v423 = vld [vmem:[%s1 + $0x68] sm:$0xff]
      %v424 = vld [vmem:[%s1 + $0x70] sm:$0xff]
      %v425 = vld [vmem:[%s1 + $0x78] sm:$0xff]
      %v426 = vld [vmem:[%s1 + $0x80] sm:$0xff]
      %v427 = vld [vmem:[%s1 + $0x88] sm:$0xff]
      %v428 = vld [vmem:[%s1 + $0x90] sm:$0x1]
      %v429 = vld [vmem:[%s1 + $0x98] sm:$0x1]
      %v430 = vlaneseq
      %v431 = vshrl.u32 %v430, 7
      %v432 = vsub.s32 0, %v431
      %v433 = vrot.slane %v428, %v432
      %434 = vmatprep.subr.mxu0 0.0
      %435 = vmatpush1.msra.mxu0 %v410
      %436 = vmatprep.subr.mxu0 0.0
      %437 = vmatpush1.msra.mxu0 %v411
      %438 = vmatprep.subr.mxu0 0.0
      %439 = vmatpush1.msra.mxu0 %v412
      %440 = vmatprep.subr.mxu0 0.0
      %441 = vmatpush1.msra.mxu0 %v413
      %442 = vmatprep.subr.mxu0 0.0
      %443 = vmatpush1.msra.mxu0 %v414
      %444 = vmatprep.subr.mxu0 0.0
      %445 = vmatpush1.msra.mxu0 %v415
      %446 = vmatprep.subr.mxu0 0.0
      %447 = vmatpush1.msra.mxu0 %v416
      %448 = vmatprep.subr.mxu0 0.0
      %449 = vmatpush1.msra.mxu0 %v417
      %450 = vmatprep.subr.mxu0 0.0
      %451 = vmatpush1.msra.mxu0 %v418
      %452 = vmatprep.subr.mxu0 0.0
      %453 = vmatpush1.msra.mxu0 %v419
      %454 = vmatprep.subr.mxu0 0.0
      %455 = vmatpush1.msra.mxu0 %v420
      %456 = vmatprep.subr.mxu0 0.0
      %457 = vmatpush1.msra.mxu0 %v421
      %458 = vmatprep.subr.mxu0 0.0
      %459 = vmatpush1.msra.mxu0 %v422
      %460 = vmatprep.subr.mxu0 0.0
      %461 = vmatpush1.msra.mxu0 %v423
      %462 = vmatprep.subr.mxu0 0.0
      %463 = vmatpush1.msra.mxu0 %v424
      %464 = vmatprep.subr.mxu0 0.0
      %465 = vmatpush1.msra.mxu0 %v425
      %466 = vmatprep.subr.mxu0 0.0
      %467 = vmatpush1.msra.mxu0 0.0
      %468 = vmatprep.subr.mxu0 0.0
      %469 = vmatpush1.msra.mxu0 0.0
      %470 = vmatprep.subr.mxu0 0.0
      %471 = vmatpush1.msra.mxu0 0.0
      %472 = vmatprep.subr.mxu0 0.0
      %473 = vmatpush1.msra.mxu0 0.0
      %474 = vmatprep.subr.mxu0 0.0
      %475 = vmatpush1.msra.mxu0 0.0
      %476 = vmatprep.subr.mxu0 0.0
      %477 = vmatpush1.msra.mxu0 0.0
      %478 = vmatprep.subr.mxu0 0.0
      %479 = vmatpush1.msra.mxu0 0.0
      %480 = vmatprep.subr.mxu0 0.0
      %481 = vmatpush1.msra.mxu0 0.0
      %482 = vmatprep.subr.mxu0 0.0
      %483 = vmatpush1.msra.mxu0 0.0
      %484 = vmatprep.subr.mxu0 0.0
      %485 = vmatpush1.msra.mxu0 0.0
      %486 = vmatprep.subr.mxu0 0.0
      %487 = vmatpush1.msra.mxu0 0.0
      %488 = vmatprep.subr.mxu0 0.0
      %489 = vmatpush1.msra.mxu0 0.0
      %490 = vmatprep.subr.mxu0 0.0
      %491 = vmatpush1.msra.mxu0 0.0
      %492 = vmatprep.subr.mxu0 0.0
      %493 = vmatpush1.msra.mxu0 0.0
      %494 = vmatprep.subr.mxu0 0.0
      %495 = vmatpush1.msra.mxu0 0.0
      %496 = vmatprep.subr.mxu0 0.0
      %497 = vmatpush1.msra.mxu0 0.0
      %498 = vmatprep.mubr.f32.mxu0 0.0
      %499 = vmatmul.mubr.f32.gmra.mrb[0].mxu0 %v409
      %v500 = vpop.f32.mrb[0].mxu0
      %v501 = vadd.f32 %v433, %v500
      %v502 = vpop.f32.mrb[0].mxu0
      %503 = vdwg.mxu0
      %vm504 = vcmp.lt.s32.totalorder %v137, 0
      %v505 = vsub.s32 0, %v137
      %v506 = vsel %vm504, %v505, %v137
      %v507 = vshrl.u32 %v506, 4
      %v508 = vand.u32 %v506, 15
      %v509 = vsub.s32 0, %v508
      %v510 = vsel %vm504, %v509, %v508
      %vm511 = vcmp.ne.s32.totalorder %v510, 0
      %vm512 = vcmp.lt.s32.totalorder %v510, 0
      %vm513 = vmand %vm512, %vm511
      %v514 = vadd.s32 %v510, 16
      %v515 = vsel %vm513, %v514, %v510
      %vm516 = vcmp.lt.s32.totalorder %v515, 8
      %v518 = vrot.slane %v501, 3
      %v520 = vrot.slane %v501, 1
      %v522 = vrot.slane %v501, 7
      %v524 = vrot.slane %v501, 5
      %v526 = vsel %vm173, %v518, %v520
      %v527 = vsel %vm175, %v526, %v522
      %v528 = vsel %vm177, %v527, %v524
      %v529 = vsel %vm516, 1, 0
      %vm530 = vcmp.eq.s32.totalorder %v529, 1
      %v531 = vsel %vm530, %v501, %v528
      %vm532 = vcmask 130048
      %v534 = vsel %vm532, 0.0, 0
      %536 = vmatprep.subr.mxu0 0.0
      %537 = vmatpush1.msra.mxu0 %v426
      %538 = vmatprep.subr.mxu0 0.0
      %539 = vmatpush1.msra.mxu0 %v427
      %540 = vmatprep.subr.mxu0 0.0
      %541 = vmatpush1.msra.mxu0 0.0
      %542 = vmatprep.subr.mxu0 0.0
      %543 = vmatpush1.msra.mxu0 0.0
      %544 = vmatprep.subr.mxu0 0.0
      %545 = vmatpush1.msra.mxu0 0.0
      %546 = vmatprep.subr.mxu0 0.0
      %547 = vmatpush1.msra.mxu0 0.0
      %548 = vmatprep.subr.mxu0 0.0
      %549 = vmatpush1.msra.mxu0 0.0
      %550 = vmatprep.subr.mxu0 0.0
      %551 = vmatpush1.msra.mxu0 0.0
      %552 = vmatprep.subr.mxu0 0.0
      %553 = vmatpush1.msra.mxu0 0.0
      %554 = vmatprep.subr.mxu0 0.0
      %555 = vmatpush1.msra.mxu0 0.0
      %556 = vmatprep.subr.mxu0 0.0
      %557 = vmatpush1.msra.mxu0 0.0
      %558 = vmatprep.subr.mxu0 0.0
      %559 = vmatpush1.msra.mxu0 0.0
      %560 = vmatprep.subr.mxu0 0.0
      %561 = vmatpush1.msra.mxu0 0.0
      %562 = vmatprep.subr.mxu0 0.0
      %563 = vmatpush1.msra.mxu0 0.0
      %564 = vmatprep.subr.mxu0 0.0
      %565 = vmatpush1.msra.mxu0 0.0
      %566 = vmatprep.subr.mxu0 0.0
      %567 = vmatpush1.msra.mxu0 0.0
      %568 = vmatprep.subr.mxu0 0.0
      %569 = vmatpush1.msra.mxu0 0.0
      %570 = vmatprep.subr.mxu0 0.0
      %571 = vmatpush1.msra.mxu0 0.0
      %572 = vmatprep.subr.mxu0 0.0
      %573 = vmatpush1.msra.mxu0 0.0
      %574 = vmatprep.subr.mxu0 0.0
      %575 = vmatpush1.msra.mxu0 0.0
      %576 = vmatprep.subr.mxu0 0.0
      %577 = vmatpush1.msra.mxu0 0.0
      %578 = vmatprep.subr.mxu0 0.0
      %579 = vmatpush1.msra.mxu0 0.0
      %580 = vmatprep.subr.mxu0 0.0
      %581 = vmatpush1.msra.mxu0 0.0
      %582 = vmatprep.subr.mxu0 0.0
      %583 = vmatpush1.msra.mxu0 0.0
      %584 = vmatprep.subr.mxu0 0.0
      %585 = vmatpush1.msra.mxu0 0.0
      %586 = vmatprep.subr.mxu0 0.0
      %587 = vmatpush1.msra.mxu0 0.0
      %588 = vmatprep.subr.mxu0 0.0
      %589 = vmatpush1.msra.mxu0 0.0
      %590 = vmatprep.subr.mxu0 0.0
      %591 = vmatpush1.msra.mxu0 0.0
      %592 = vmatprep.subr.mxu0 0.0
      %593 = vmatpush1.msra.mxu0 0.0
      %594 = vmatprep.subr.mxu0 0.0
      %595 = vmatpush1.msra.mxu0 0.0
      %596 = vmatprep.subr.mxu0 0.0
      %597 = vmatpush1.msra.mxu0 0.0
      %598 = vmatprep.subr.mxu0 0.0
      %599 = vmatpush1.msra.mxu0 0.0
      %600 = vmatprep.mubr.f32.mxu0 0.0
      %601 = vmatmul.mubr.f32.gmra.mrb[0].mxu0 %v534
      %v602 = vpop.f32.mrb[0].mxu0
      %v603 = vadd.f32 %v429, %v602
      %v604 = vpop.f32.mrb[0].mxu0
      %605 = vdwg.mxu0
      %v606 = vadd.f32 %v531, %v603
      %v607 = vxor.u32 %v606, 2147483648
      %v608 = vmul.f32 %v607, 1.442695
      %v609 = vpow.pop %v608
      %v610 = vadd.f32 %v609, 1.0
      %v611 = vrcp.pop %v610
      %v612 = vmul.f32 1.0, %v611
      %614 = vrot.lane.b32.xlu0 %v603, 96
      %v615 = vpop.permute.xlu0 %614
      %v617 = vmul.f32 %v612, %v615
      %619 = vrot.lane.b32.xlu0 %v617, 32
      %v620 = vpop.permute.xlu0 %619
      %v622 = vadd.f32 %v531, %v620
      %v623 = vtanh.pop %v622
      %v624 = vsub.f32 1.0, %v612
      %626 = vrot.lane.b32.xlu0 %v623, 112
      %v627 = vpop.permute.xlu0 %626
      %v629 = vmul.f32 %v624, %v627
      %v630 = vmul.f32 %v612, 0.0
      %v631 = vadd.f32 %v629, %v630
      %633 = vrot.lane.b32.xlu0 %v631, 112
      %v634 = vpop.permute.xlu0 %633
      %v635 = vsel %vm532, %v634, 0
      %637 = vmatprep.subr.mxu0 0.0
      %638 = vmatpush1.msra.mxu0 %v426
      %639 = vmatprep.subr.mxu0 0.0
      %640 = vmatpush1.msra.mxu0 %v427
      %641 = vmatprep.subr.mxu0 0.0
      %642 = vmatpush1.msra.mxu0 0.0
      %643 = vmatprep.subr.mxu0 0.0
      %644 = vmatpush1.msra.mxu0 0.0
      %645 = vmatprep.subr.mxu0 0.0
      %646 = vmatpush1.msra.mxu0 0.0
      %647 = vmatprep.subr.mxu0 0.0
      %648 = vmatpush1.msra.mxu0 0.0
      %649 = vmatprep.subr.mxu0 0.0
      %650 = vmatpush1.msra.mxu0 0.0
      %651 = vmatprep.subr.mxu0 0.0
      %652 = vmatpush1.msra.mxu0 0.0
      %653 = vmatprep.subr.mxu0 0.0
      %654 = vmatpush1.msra.mxu0 0.0
      %655 = vmatprep.subr.mxu0 0.0
      %656 = vmatpush1.msra.mxu0 0.0
      %657 = vmatprep.subr.mxu0 0.0
      %658 = vmatpush1.msra.mxu0 0.0
      %659 = vmatprep.subr.mxu0 0.0
      %660 = vmatpush1.msra.mxu0 0.0
      %661 = vmatprep.subr.mxu0 0.0
      %662 = vmatpush1.msra.mxu0 0.0
      %663 = vmatprep.subr.mxu0 0.0
      %664 = vmatpush1.msra.mxu0 0.0
      %665 = vmatprep.subr.mxu0 0.0
      %666 = vmatpush1.msra.mxu0 0.0
      %667 = vmatprep.subr.mxu0 0.0
      %668 = vmatpush1.msra.mxu0 0.0
      %669 = vmatprep.subr.mxu0 0.0
      %670 = vmatpush1.msra.mxu0 0.0
      %671 = vmatprep.subr.mxu0 0.0
      %672 = vmatpush1.msra.mxu0 0.0
      %673 = vmatprep.subr.mxu0 0.0
      %674 = vmatpush1.msra.mxu0 0.0
      %675 = vmatprep.subr.mxu0 0.0
      %676 = vmatpush1.msra.mxu0 0.0
      %677 = vmatprep.subr.mxu0 0.0
      %678 = vmatpush1.msra.mxu0 0.0
      %679 = vmatprep.subr.mxu0 0.0
      %680 = vmatpush1.msra.mxu0 0.0
      %681 = vmatprep.subr.mxu0 0.0
      %682 = vmatpush1.msra.mxu0 0.0
      %683 = vmatprep.subr.mxu0 0.0
      %684 = vmatpush1.msra.mxu0 0.0
      %685 = vmatprep.subr.mxu0 0.0
      %686 = vmatpush1.msra.mxu0 0.0
      %687 = vmatprep.subr.mxu0 0.0
      %688 = vmatpush1.msra.mxu0 0.0
      %689 = vmatprep.subr.mxu0 0.0
      %690 = vmatpush1.msra.mxu0 0.0
      %691 = vmatprep.subr.mxu0 0.0
      %692 = vmatpush1.msra.mxu0 0.0
      %693 = vmatprep.subr.mxu0 0.0
      %694 = vmatpush1.msra.mxu0 0.0
      %695 = vmatprep.subr.mxu0 0.0
      %696 = vmatpush1.msra.mxu0 0.0
      %697 = vmatprep.subr.mxu0 0.0
      %698 = vmatpush1.msra.mxu0 0.0
      %699 = vmatprep.subr.mxu0 0.0
      %700 = vmatpush1.msra.mxu0 0.0
      %701 = vmatprep.mubr.f32.mxu0 0.0
      %702 = vmatmul.mubr.f32.gmra.mrb[0].mxu0 %v635
      %v703 = vpop.f32.mrb[0].mxu0
      %v704 = vadd.f32 %v429, %v703
      %v705 = vpop.f32.mrb[0].mxu0
      %706 = vdwg.mxu0
      %v708 = vrot.slane %v704, 7
      %v710 = vadd.f32 %v531, %v708
      %v711 = vxor.u32 %v710, 2147483648
      %v712 = vmul.f32 %v711, 1.442695
      %v713 = vpow.pop %v712
      %v714 = vadd.f32 %v713, 1.0
      %v715 = vrcp.pop %v714
      %v716 = vmul.f32 1.0, %v715
      %717 = vrot.lane.b32.xlu0 %v708, 96
      %v718 = vpop.permute.xlu0 %717
      %v720 = vmul.f32 %v716, %v718
      %722 = vrot.lane.b32.xlu0 %v720, 32
      %v723 = vpop.permute.xlu0 %722
      %v725 = vadd.f32 %v531, %v723
      %v726 = vtanh.pop %v725
      %v727 = vsub.f32 1.0, %v716
      %729 = vrot.lane.b32.xlu0 %v726, 112
      %v730 = vpop.permute.xlu0 %729
      %v732 = vmul.f32 %v727, %v730
      %v733 = vrot.slane %v631, 7
      %v735 = vmul.f32 %v716, %v733
      %v736 = vadd.f32 %v732, %v735
      %v738 = vrot.slane %v736, 1
      %739 = vrot.lane.b32.xlu0 %v738, 112
      %v740 = vpop.permute.xlu0 %739
      %v741 = vsel %vm532, %v740, 0
      %743 = vmatprep.subr.mxu0 0.0
      %744 = vmatpush1.msra.mxu0 %v426
      %745 = vmatprep.subr.mxu0 0.0
      %746 = vmatpush1.msra.mxu0 %v427
      %747 = vmatprep.subr.mxu0 0.0
      %748 = vmatpush1.msra.mxu0 0.0
      %749 = vmatprep.subr.mxu0 0.0
      %750 = vmatpush1.msra.mxu0 0.0
      %751 = vmatprep.subr.mxu0 0.0
      %752 = vmatpush1.msra.mxu0 0.0
      %753 = vmatprep.subr.mxu0 0.0
      %754 = vmatpush1.msra.mxu0 0.0
      %755 = vmatprep.subr.mxu0 0.0
      %756 = vmatpush1.msra.mxu0 0.0
      %757 = vmatprep.subr.mxu0 0.0
      %758 = vmatpush1.msra.mxu0 0.0
      %759 = vmatprep.subr.mxu0 0.0
      %760 = vmatpush1.msra.mxu0 0.0
      %761 = vmatprep.subr.mxu0 0.0
      %762 = vmatpush1.msra.mxu0 0.0
      %763 = vmatprep.subr.mxu0 0.0
      %764 = vmatpush1.msra.mxu0 0.0
      %765 = vmatprep.subr.mxu0 0.0
      %766 = vmatpush1.msra.mxu0 0.0
      %767 = vmatprep.subr.mxu0 0.0
      %768 = vmatpush1.msra.mxu0 0.0
      %769 = vmatprep.subr.mxu0 0.0
      %770 = vmatpush1.msra.mxu0 0.0
      %771 = vmatprep.subr.mxu0 0.0
      %772 = vmatpush1.msra.mxu0 0.0
      %773 = vmatprep.subr.mxu0 0.0
      %774 = vmatpush1.msra.mxu0 0.0
      %775 = vmatprep.subr.mxu0 0.0
      %776 = vmatpush1.msra.mxu0 0.0
      %777 = vmatprep.subr.mxu0 0.0
      %778 = vmatpush1.msra.mxu0 0.0
      %779 = vmatprep.subr.mxu0 0.0
      %780 = vmatpush1.msra.mxu0 0.0
      %781 = vmatprep.subr.mxu0 0.0
      %782 = vmatpush1.msra.mxu0 0.0
      %783 = vmatprep.subr.mxu0 0.0
      %784 = vmatpush1.msra.mxu0 0.0
      %785 = vmatprep.subr.mxu0 0.0
      %786 = vmatpush1.msra.mxu0 0.0
      %787 = vmatprep.subr.mxu0 0.0
      %788 = vmatpush1.msra.mxu0 0.0
      %789 = vmatprep.subr.mxu0 0.0
      %790 = vmatpush1.msra.mxu0 0.0
      %791 = vmatprep.subr.mxu0 0.0
      %792 = vmatpush1.msra.mxu0 0.0
      %793 = vmatprep.subr.mxu0 0.0
      %794 = vmatpush1.msra.mxu0 0.0
      %795 = vmatprep.subr.mxu0 0.0
      %796 = vmatpush1.msra.mxu0 0.0
      %797 = vmatprep.subr.mxu0 0.0
      %798 = vmatpush1.msra.mxu0 0.0
      %799 = vmatprep.subr.mxu0 0.0
      %800 = vmatpush1.msra.mxu0 0.0
      %801 = vmatprep.subr.mxu0 0.0
      %802 = vmatpush1.msra.mxu0 0.0
      %803 = vmatprep.subr.mxu0 0.0
      %804 = vmatpush1.msra.mxu0 0.0
      %805 = vmatprep.subr.mxu0 0.0
      %806 = vmatpush1.msra.mxu0 0.0
      %807 = vmatprep.mubr.f32.mxu0 0.0
      %808 = vmatmul.mubr.f32.gmra.mrb[0].mxu0 %v741
      %v809 = vpop.f32.mrb[0].mxu0
      %v810 = vadd.f32 %v429, %v809
      %v811 = vpop.f32.mrb[0].mxu0
      %812 = vdwg.mxu0
      %v814 = vrot.slane %v810, 6
      %v816 = vadd.f32 %v531, %v814
      %v817 = vxor.u32 %v816, 2147483648
      %v818 = vmul.f32 %v817, 1.442695
      %v819 = vpow.pop %v818
      %v820 = vadd.f32 %v819, 1.0
      %v821 = vrcp.pop %v820
      %v822 = vmul.f32 1.0, %v821
      %823 = vrot.lane.b32.xlu0 %v814, 96
      %v824 = vpop.permute.xlu0 %823
      %v826 = vmul.f32 %v822, %v824
      %828 = vrot.lane.b32.xlu0 %v826, 32
      %v829 = vpop.permute.xlu0 %828
      %v831 = vadd.f32 %v531, %v829
      %v832 = vtanh.pop %v831
      %v833 = vsub.f32 1.0, %v822
      %835 = vrot.lane.b32.xlu0 %v832, 112
      %v836 = vpop.permute.xlu0 %835
      %v838 = vmul.f32 %v833, %v836
      %v839 = vrot.slane %v736, 7
      %v841 = vmul.f32 %v822, %v839
      %v842 = vadd.f32 %v838, %v841
      %v844 = vrot.slane %v842, 2
      %845 = vrot.lane.b32.xlu0 %v844, 112
      %v846 = vpop.permute.xlu0 %845
      %v847 = vsel %vm532, %v846, 0
      %849 = vmatprep.subr.mxu0 0.0
      %850 = vmatpush1.msra.mxu0 %v426
      %851 = vmatprep.subr.mxu0 0.0
      %852 = vmatpush1.msra.mxu0 %v427
      %853 = vmatprep.subr.mxu0 0.0
      %854 = vmatpush1.msra.mxu0 0.0
      %855 = vmatprep.subr.mxu0 0.0
      %856 = vmatpush1.msra.mxu0 0.0
      %857 = vmatprep.subr.mxu0 0.0
      %858 = vmatpush1.msra.mxu0 0.0
      %859 = vmatprep.subr.mxu0 0.0
      %860 = vmatpush1.msra.mxu0 0.0
      %861 = vmatprep.subr.mxu0 0.0
      %862 = vmatpush1.msra.mxu0 0.0
      %863 = vmatprep.subr.mxu0 0.0
      %864 = vmatpush1.msra.mxu0 0.0
      %865 = vmatprep.subr.mxu0 0.0
      %866 = vmatpush1.msra.mxu0 0.0
      %867 = vmatprep.subr.mxu0 0.0
      %868 = vmatpush1.msra.mxu0 0.0
      %869 = vmatprep.subr.mxu0 0.0
      %870 = vmatpush1.msra.mxu0 0.0
      %871 = vmatprep.subr.mxu0 0.0
      %872 = vmatpush1.msra.mxu0 0.0
      %873 = vmatprep.subr.mxu0 0.0
      %874 = vmatpush1.msra.mxu0 0.0
      %875 = vmatprep.subr.mxu0 0.0
      %876 = vmatpush1.msra.mxu0 0.0
      %877 = vmatprep.subr.mxu0 0.0
      %878 = vmatpush1.msra.mxu0 0.0
      %879 = vmatprep.subr.mxu0 0.0
      %880 = vmatpush1.msra.mxu0 0.0
      %881 = vmatprep.subr.mxu0 0.0
      %882 = vmatpush1.msra.mxu0 0.0
      %883 = vmatprep.subr.mxu0 0.0
      %884 = vmatpush1.msra.mxu0 0.0
      %885 = vmatprep.subr.mxu0 0.0
      %886 = vmatpush1.msra.mxu0 0.0
      %887 = vmatprep.subr.mxu0 0.0
      %888 = vmatpush1.msra.mxu0 0.0
      %889 = vmatprep.subr.mxu0 0.0
      %890 = vmatpush1.msra.mxu0 0.0
      %891 = vmatprep.subr.mxu0 0.0
      %892 = vmatpush1.msra.mxu0 0.0
      %893 = vmatprep.subr.mxu0 0.0
      %894 = vmatpush1.msra.mxu0 0.0
      %895 = vmatprep.subr.mxu0 0.0
      %896 = vmatpush1.msra.mxu0 0.0
      %897 = vmatprep.subr.mxu0 0.0
      %898 = vmatpush1.msra.mxu0 0.0
      %899 = vmatprep.subr.mxu0 0.0
      %900 = vmatpush1.msra.mxu0 0.0
      %901 = vmatprep.subr.mxu0 0.0
      %902 = vmatpush1.msra.mxu0 0.0
      %903 = vmatprep.subr.mxu0 0.0
      %904 = vmatpush1.msra.mxu0 0.0
      %905 = vmatprep.subr.mxu0 0.0
      %906 = vmatpush1.msra.mxu0 0.0
      %907 = vmatprep.subr.mxu0 0.0
      %908 = vmatpush1.msra.mxu0 0.0
      %909 = vmatprep.subr.mxu0 0.0
      %910 = vmatpush1.msra.mxu0 0.0
      %911 = vmatprep.subr.mxu0 0.0
      %912 = vmatpush1.msra.mxu0 0.0
      %913 = vmatprep.mubr.f32.mxu0 0.0
      %914 = vmatmul.mubr.f32.gmra.mrb[0].mxu0 %v847
      %v915 = vpop.f32.mrb[0].mxu0
      %v916 = vadd.f32 %v429, %v915
      %v917 = vpop.f32.mrb[0].mxu0
      %918 = vdwg.mxu0
      %v920 = vrot.slane %v916, 5
      %v922 = vadd.f32 %v531, %v920
      %v923 = vxor.u32 %v922, 2147483648
      %v924 = vmul.f32 %v923, 1.442695
      %v925 = vpow.pop %v924
      %v926 = vadd.f32 %v925, 1.0
      %v927 = vrcp.pop %v926
      %v928 = vmul.f32 1.0, %v927
      %929 = vrot.lane.b32.xlu0 %v920, 96
      %v930 = vpop.permute.xlu0 %929
      %v932 = vmul.f32 %v928, %v930
      %934 = vrot.lane.b32.xlu0 %v932, 32
      %v935 = vpop.permute.xlu0 %934
      %v937 = vadd.f32 %v531, %v935
      %v938 = vtanh.pop %v937
      %v939 = vsub.f32 1.0, %v928
      %941 = vrot.lane.b32.xlu0 %v938, 112
      %v942 = vpop.permute.xlu0 %941
      %v944 = vmul.f32 %v939, %v942
      %v945 = vrot.slane %v842, 7
      %v947 = vmul.f32 %v928, %v945
      %v948 = vadd.f32 %v944, %v947
      %v951 = vrot.slane %v948, 3
      %952 = vrot.lane.b32.xlu0 %v951, 112
      %v953 = vpop.permute.xlu0 %952
      %v955 = vsel %vm187, %v634, %v953
      %956 = vrot.lane.b32.xlu0 %v736, 112
      %v957 = vpop.permute.xlu0 %956
      %v959 = vrot.slane %v842, 1
      %960 = vrot.lane.b32.xlu0 %v959, 112
      %v961 = vpop.permute.xlu0 %960
      %v963 = vsel %vm187, %v957, %v961
      %964 = vrot.lane.b32.xlu0 %v842, 112
      %v965 = vpop.permute.xlu0 %964
      %967 = vrot.lane.b32.xlu0 %v839, 112
      %v968 = vpop.permute.xlu0 %967
      %v970 = vsel %vm187, %v965, %v968
      %971 = vrot.lane.b32.xlu0 %v948, 112
      %v972 = vpop.permute.xlu0 %971
      %v974 = vrot.slane %v631, 5
      %975 = vrot.lane.b32.xlu0 %v974, 112
      %v976 = vpop.permute.xlu0 %975
      %v978 = vsel %vm187, %v972, %v976
      %v979 = vsel %vm173, %v955, %v963
      %v980 = vsel %vm175, %v979, %v970
      %v981 = vsel %vm177, %v980, %v978
      %vm982 = vcmask 125952
      %983 = vst.msk [vmem:[%s135] sm:$0xf] %vm982, %v981
      %p984 = scmp.lt.s32.totalorder %s13, 7
      %s985 = scalar_select %p984, %s13, 7
      %s986 = smul.addr %s985, 4
      %s987 = scalar_lea.vmem %s2, %s986
      // Predicated region
      $region29: #{hnet_forward.1} parent=27 // pred_check
        %p988 = pneg %p78
      $region30: #{hnet_forward.1} parent=27 // pred_check_branch
        %990 = sbr.rel (%p988) target = $region32
      $region31: #{hnet_forward.1} parent=27 // pred_region
        _
      $region32: #{hnet_forward.1} parent=27 // pred_fallthru
        _
    $region28: #{hnet_forward.1} parent=5 // pred_fallthru
      _
    %p991 = scmp.le.s32.totalorder 2, %s8
    // Predicated region
    $region33: #{hnet_forward.1} parent=5 // pred_check
      %p992 = pneg %p991
    $region34: #{hnet_forward.1} parent=5 // pred_check_branch
      %994 = sbr.rel (%p992) target = $region36
    $region35: #{hnet_forward.1} parent=5 // pred_region
      %s995 = ssub.s32 %s8, 2
      // Predicated region
      $region37: #{hnet_forward.1} parent=35 // pred_check
        %p996 = pneg %p84
      $region38: #{hnet_forward.1} parent=35 // pred_check_branch
        %998 = sbr.rel (%p996) target = $region40
      $region39: #{hnet_forward.1} parent=35 // pred_region
        %p999 = scmp.lt.s32.totalorder %s14, 7
        %s1000 = scalar_select %p999, %s14, 7
        %s1001 = smul.addr %s1000, 4
        %s1002 = scalar_lea.vmem %s2, %s1001
      $region40: #{hnet_forward.1} parent=35 // pred_fallthru
        _
    $region36: #{hnet_forward.1} parent=5 // pred_fallthru
      _
  $region6: #{hnet_forward.1} parent=0 // loop_footer
    %s12 = sadd.s32 1, %s8
  $region7: #{hnet_forward.1} parent=0 // loop_footer_branch
    %7 = sbr.rel target = $region3
  $region8: #{hnet_forward.1} parent=0 // loop_exit
    _

</llo_original>
